<compile_context>
chip_gen: v7x
topology: tpu7x:2x2x1
jax: 0.10.0
libtpu: 0.0.40
codegen_flags: <defaults>
</compile_context>

<pallas_src>
import functools
import math

import jax
import jax.numpy as jnp
from jax.experimental import pallas as pl
from jax.experimental.pallas import tpu as pltpu


def _round_up(a, b):
    return (a + b - 1) // b * b


def _vmem_capacity_bytes():
    try:
        return int(pltpu.get_tpu_info().vmem_capacity_bytes)
    except Exception:
        return 64 * 1024 * 1024  # conservative fallback (v7x per-core VMEM)


def mlp_kernel(x_ref, w1_ref, b1_ref, w2_ref, b2_ref, o_ref, acc_ref, *,
               approximate_gelu, precision):
    k = pl.program_id(1)

    @pl.when(k == 0)
    def _init():
        acc_ref[...] = jnp.zeros_like(acc_ref)

    # Cast the activation to the MXU compute dtype *inside* the kernel (no
    # extra wrapper-side HBM pass); accumulate in f32.
    x = x_ref[...].astype(w1_ref.dtype)
    h = jnp.dot(x, w1_ref[...],
                preferred_element_type=jnp.float32, precision=precision)
    h = h + b1_ref[...]
    if approximate_gelu:
        # tanh approximation -> transcendental goes to the (otherwise idle) EUP.
        h = jax.nn.gelu(h, approximate=True)
    else:
        # exact erf GELU in f32, matching torch.nn.GELU() default.
        h = 0.5 * h * (1.0 + jax.lax.erf(h * (1.0 / math.sqrt(2.0))))
    # TODO(synk): dropout is identity here (p=0.0 / eval mode); no RNG masking emitted.
    acc_ref[...] += jnp.dot(h.astype(w2_ref.dtype), w2_ref[...],
                            preferred_element_type=jnp.float32, precision=precision)

    @pl.when(k == pl.num_programs(1) - 1)
    def _finalize():
        o_ref[...] = (acc_ref[...] + b2_ref[...]).astype(o_ref.dtype)


def prepare_mlp_params(w1, b1, w2, b2, *, compute_dtype=jnp.bfloat16):
    """One-time pad/cast of the weights (hoisted out of the per-call path).

    Channel dims are zero-padded to multiples of 128 (lane-dense MXU/VPU tiles,
    no masked stores).  Zero padding is exact: padded mid channels get bias 0
    -> GELU(0)=0 -> multiplied by zero w2 rows.
    """
    c_in, c_mid = w1.shape
    c_out = w2.shape[1]
    c_in_p = _round_up(c_in, 128)
    c_mid_p = _round_up(c_mid, 128)
    c_out_p = _round_up(c_out, 128)
    w1_p = jnp.pad(w1, ((0, c_in_p - c_in), (0, c_mid_p - c_mid))).astype(compute_dtype)
    w2_p = jnp.pad(w2, ((0, c_mid_p - c_mid), (0, c_out_p - c_out))).astype(compute_dtype)
    # Biases stay f32 (added after the f32-accumulated matmuls).
    b1_p = jnp.pad(b1.astype(jnp.float32), (0, c_mid_p - c_mid)).reshape(1, c_mid_p)
    b2_p = jnp.pad(b2.astype(jnp.float32), (0, c_out_p - c_out)).reshape(1, c_out_p)
    return {"w1": w1_p, "b1": b1_p, "w2": w2_p, "b2": b2_p,
            "c_in": c_in, "c_out": c_out, "compute_dtype": compute_dtype}


def mlp_pallas(x, params, *, tm=None, approximate_gelu=False, out_dtype=None):
    """x: (..., C_in); params from prepare_mlp_params."""
    w1_p, b1_p, w2_p, b2_p = params["w1"], params["b1"], params["w2"], params["b2"]
    c_in, c_out = params["c_in"], params["c_out"]
    compute_dtype = params["compute_dtype"]

    orig_shape = x.shape
    assert orig_shape[-1] == c_in
    out_dtype = out_dtype or x.dtype

    c_in_p, c_mid_p = w1_p.shape
    c_out_p = w2_p.shape[1]

    x2d = x.reshape(-1, c_in)
    M = x2d.shape[0]

    x_itemsize = jnp.dtype(x.dtype).itemsize
    w_itemsize = jnp.dtype(compute_dtype).itemsize
    out_itemsize = jnp.dtype(out_dtype).itemsize

    vmem_cap = _vmem_capacity_bytes()
    budget = int(0.75 * vmem_cap)

    # Per-generation default row tile: 128 MiB parts (v5e/v6e) take 512
    # (1024 for small hidden dims); 64 MiB parts (v7x per-core) take 256.
    if tm is None:
        if vmem_cap >= 100 * 1024 * 1024:
            tm = 1024 if c_mid_p <= 1024 else 512
        else:
            tm = 256

    # Row tile: multiple of 16 (bf16 sublane packing), clamped to the
    # rounded-up row count; ragged rows are zero-padded.
    tm_eff = max(16, _round_up(min(tm, _round_up(M, 16)), 16))

    def footprint(tm_, tk_, resident):
        nbuf = 1 if resident else 2
        return (2 * tm_ * c_in_p * x_itemsize                     # x tiles (double-buffered)
                + 2 * tm_ * c_out_p * out_itemsize                 # out tiles (double-buffered)
                + nbuf * (c_in_p * tk_ + tk_ * c_out_p) * w_itemsize  # w1/w2 chunks
                + nbuf * tk_ * 4 + c_out_p * 4                     # biases (f32)
                + tm_ * c_out_p * 4                                # f32 accumulator scratch
                + tm_ * tk_ * 4)                                   # f32 GELU intermediate

    def choose_mid_tile(tm_):
        # Keep whole weights resident (single-buffered constant blocks) if they
        # fit; otherwise stream c_mid chunks over a reduction grid axis.
        if footprint(tm_, c_mid_p, True) <= budget:
            return c_mid_p
        n = c_mid_p // 128
        for d in range(n, 0, -1):
            if n % d == 0:
                tk_ = 128 * d
                if footprint(tm_, tk_, tk_ == c_mid_p) <= budget:
                    return tk_
        return 128

    tk_mid = choose_mid_tile(tm_eff)
    while tm_eff > 16 and footprint(tm_eff, tk_mid, tk_mid == c_mid_p) > budget:
        tm_eff = max(16, _round_up(tm_eff // 2, 16))
        tk_mid = choose_mid_tile(tm_eff)

    M_pad = _round_up(M, tm_eff)
    grid_m = M_pad // tm_eff
    grid_k = c_mid_p // tk_mid
    resident = grid_k == 1

    # x stays in its stored dtype; only pad if needed (cast happens in-kernel).
    x_p = x2d
    if M_pad != M or c_in_p != c_in:
        x_p = jnp.pad(x2d, ((0, M_pad - M), (0, c_in_p - c_in)))

    # f32 compute path must not be silently decomposed into bf16 MXU passes.
    precision = jax.lax.Precision.HIGHEST if compute_dtype == jnp.float32 else None

    kernel = functools.partial(mlp_kernel,
                               approximate_gelu=approximate_gelu,
                               precision=precision)

    weight_bytes = (c_in_p * c_mid_p + c_mid_p * c_out_p) * w_itemsize
    cost = pl.CostEstimate(
        flops=2 * M_pad * (c_in_p * c_mid_p + c_mid_p * c_out_p),
        transcendentals=M_pad * c_mid_p,
        bytes_accessed=int(M_pad * c_in_p * x_itemsize
                           + (1 if resident else grid_m) * weight_bytes
                           + (c_mid_p + c_out_p) * 4
                           + M_pad * c_out_p * out_itemsize),
    )

    working_set = footprint(tm_eff, tk_mid, resident)
    vmem_limit = int(min(int(0.9 * vmem_cap),
                         max(32 * 1024 * 1024, int(1.3 * working_set))))

    def wspec(shape, index_map):
        # Constant index -> DMA'd once and kept resident; single-buffer it.
        if resident:
            return pl.BlockSpec(shape, index_map, pipeline_mode=pl.Buffered(1))
        return pl.BlockSpec(shape, index_map)

    in_specs = [
        pl.BlockSpec((tm_eff, c_in_p), lambda i, k: (i, 0)),
        wspec((c_in_p, tk_mid), lambda i, k: (0, k)),
        wspec((1, tk_mid), lambda i, k: (0, k)),
        wspec((tk_mid, c_out_p), lambda i, k: (k, 0)),
        pl.BlockSpec((1, c_out_p), lambda i, k: (0, 0), pipeline_mode=pl.Buffered(1)),
    ]

    out2d = pl.pallas_call(
        kernel,
        out_shape=jax.ShapeDtypeStruct((M_pad, c_out_p), out_dtype),
        grid_spec=pltpu.PrefetchScalarGridSpec(
            num_scalar_prefetch=0,
            grid=(grid_m, grid_k),                   # reduction axis (c_mid) last
            in_specs=in_specs,
            out_specs=pl.BlockSpec((tm_eff, c_out_p), lambda i, k: (i, 0)),
            scratch_shapes=[pltpu.VMEM((tm_eff, c_out_p), jnp.float32)],
        ),
        compiler_params=pltpu.CompilerParams(
            dimension_semantics=("parallel", "arbitrary"),  # M tiles shard across TCs
            vmem_limit_bytes=vmem_limit,
        ),
        cost_estimate=cost,
    )(x_p, w1_p, b1_p, w2_p, b2_p)

    return out2d[:M, :c_out].reshape(*orig_shape[:-1], c_out)


def init_mlp_params(key, inplanes, midplanes, outplanes, dtype=jnp.float32):
    """Deterministic init mimicking nn.Linear's kaiming-uniform / bias bounds."""
    k1, k2, k3, k4 = jax.random.split(key, 4)
    bound1 = 1.0 / math.sqrt(inplanes)
    bound2 = 1.0 / math.sqrt(midplanes)
    # stored transposed relative to torch: (in, out)
    w1 = jax.random.uniform(k1, (inplanes, midplanes), dtype, -bound1, bound1)
    b1 = jax.random.uniform(k2, (midplanes,), dtype, -bound1, bound1)
    w2 = jax.random.uniform(k3, (midplanes, outplanes), dtype, -bound2, bound2)
    b2 = jax.random.uniform(k4, (outplanes,), dtype, -bound2, bound2)
    return w1, b1, w2, b2


if __name__ == "__main__":
    key = jax.random.PRNGKey(0)
    kx, kp = jax.random.split(key)

    batch, seq, inplanes = 2, 8, 32
    midplanes, outplanes = 64, 32

    x = jax.random.normal(kx, (batch, seq, inplanes), dtype=jnp.float32)
    w1, b1, w2, b2 = init_mlp_params(kp, inplanes, midplanes, outplanes)

    # reference in plain JAX (f32, erf GELU = torch.nn.GELU() default)
    h_ref = x @ w1 + b1
    h_ref = 0.5 * h_ref * (1.0 + jax.lax.erf(h_ref / math.sqrt(2.0)))
    ref = h_ref @ w2 + b2

    # 1) f32 compute path (HIGHEST matmul precision): exact match.
    params_f32 = prepare_mlp_params(w1, b1, w2, b2, compute_dtype=jnp.float32)
    out_f32 = jax.block_until_ready(mlp_pallas(x, params_f32))
    assert out_f32.shape == (batch, seq, outplanes)
    assert jnp.allclose(out_f32, ref, atol=1e-5, rtol=1e-5)

    # 2) bf16 MXU-operand fast path (default): loose tolerance.
    params_bf16 = prepare_mlp_params(w1, b1, w2, b2, compute_dtype=jnp.bfloat16)
    out_bf16 = jax.block_until_ready(mlp_pallas(x, params_bf16))
    assert out_bf16.shape == (batch, seq, outplanes)
    assert jnp.allclose(out_bf16, ref, atol=5e-2, rtol=5e-2)

    # 3) opt-in tanh-approximate GELU (EUP path); slightly differs from erf.
    out_tanh = jax.block_until_ready(mlp_pallas(x, params_bf16, approximate_gelu=True))
    assert out_tanh.shape == (batch, seq, outplanes)
    assert jnp.allclose(out_tanh, ref, atol=1e-1, rtol=1e-1)

    print("KERNEL_OK")
</pallas_src>

<mosaic_0001>
module attributes {stable_mosaic.version = 11 : i64} {
  func.func @mlp_kernel(%arg0: i32, %arg1: i32, %arg2: memref<16x128xf32, #tpu.memory_space<vmem>>, %arg3: memref<128x128xf32, #tpu.memory_space<vmem>>, %arg4: memref<1x128xf32, #tpu.memory_space<vmem>>, %arg5: memref<128x128xf32, #tpu.memory_space<vmem>>, %arg6: memref<1x128xf32, #tpu.memory_space<vmem>>, %arg7: memref<16x128xf32, #tpu.memory_space<vmem>>, %arg8: memref<16x128xf32, #tpu.memory_space<vmem>>) attributes {dimension_semantics = [#tpu.dimension_semantics<parallel>, #tpu.dimension_semantics<arbitrary>], iteration_bounds = array<i64: 1, 1>, scalar_prefetch = 0 : i64, scratch_operands = 1 : i64, tpu.core_type = #tpu.core_type<tc>, window_params = [{transform_indices = @transform_0, window_bounds = array<i64: 16, 128>}, {pipeline_mode = #tpu.pipeline_mode<synchronous>, transform_indices = @transform_1, window_bounds = array<i64: 128, 128>}, {pipeline_mode = #tpu.pipeline_mode<synchronous>, transform_indices = @transform_2, window_bounds = array<i64: 1, 128>}, {pipeline_mode = #tpu.pipeline_mode<synchronous>, transform_indices = @transform_3, window_bounds = array<i64: 128, 128>}, {pipeline_mode = #tpu.pipeline_mode<synchronous>, transform_indices = @transform_4, window_bounds = array<i64: 1, 128>}, {transform_indices = @transform_5, window_bounds = array<i64: 16, 128>}]} {
    %c0_i32 = arith.constant 0 : i32
    %0 = arith.cmpi eq, %arg1, %c0_i32 : i32
    %1 = arith.extui %0 : i1 to i32
    %c0_i32_0 = arith.constant 0 : i32
    %2 = arith.cmpi ne, %1, %c0_i32_0 : i32
    scf.if %2 {
      %cst_18 = arith.constant 0.000000e+00 : f32
      %25 = vector.broadcast %cst_18 : f32 to vector<16x128xf32>
      %c0_19 = arith.constant 0 : index
      %c0_20 = arith.constant 0 : index
      %26 = vector.load %arg8[%c0_19, %c0_20] : memref<16x128xf32, #tpu.memory_space<vmem>>, vector<16x128xf32>
      tpu.vector_store %arg8[%c0_19, %c0_20], %25 {strides = array<i32>} : memref<16x128xf32, #tpu.memory_space<vmem>>, vector<16x128xf32>,
    } else {
    }
    %c0 = arith.constant 0 : index
    %c0_1 = arith.constant 0 : index
    %3 = vector.load %arg2[%c0, %c0_1] : memref<16x128xf32, #tpu.memory_space<vmem>>, vector<16x128xf32>
    %c0_2 = arith.constant 0 : index
    %c0_3 = arith.constant 0 : index
    %4 = vector.load %arg3[%c0_2, %c0_3] : memref<128x128xf32, #tpu.memory_space<vmem>>, vector<128x128xf32>
    %cst = arith.constant dense<0.000000e+00> : vector<16x128xf32>
    %5 = tpu.matmul %3, %4, %cst {dimension_numbers = #tpu.dot_dimension_numbers<[1], [0], [0], [1], [0, 0, 1, 1], [], []>, precision = #tpu.contract_precision<fp32>} : vector<16x128xf32>, vector<128x128xf32>, vector<16x128xf32> -> vector<16x128xf32>
    %c0_4 = arith.constant 0 : index
    %c0_5 = arith.constant 0 : index
    %6 = vector.load %arg4[%c0_4, %c0_5] : memref<1x128xf32, #tpu.memory_space<vmem>>, vector<1x128xf32>
    %7 = vector.broadcast %6 : vector<1x128xf32> to vector<16x128xf32>
    %8 = arith.addf %5, %7 : vector<16x128xf32>
    %cst_6 = arith.constant 5.000000e-01 : f32
    %9 = vector.broadcast %cst_6 : f32 to vector<16x128xf32>
    %10 = arith.mulf %9, %8 : vector<16x128xf32>
    %cst_7 = arith.constant 0.707106769 : f32
    %11 = vector.broadcast %cst_7 : f32 to vector<16x128xf32>
    %12 = arith.mulf %8, %11 : vector<16x128xf32>
    %13 = math.erf %12 : vector<16x128xf32>
    %cst_8 = arith.constant 1.000000e+00 : f32
    %14 = vector.broadcast %cst_8 : f32 to vector<16x128xf32>
    %15 = arith.addf %14, %13 : vector<16x128xf32>
    %16 = arith.mulf %10, %15 : vector<16x128xf32>
    %c0_9 = arith.constant 0 : index
    %c0_10 = arith.constant 0 : index
    %17 = vector.load %arg8[%c0_9, %c0_10] : memref<16x128xf32, #tpu.memory_space<vmem>>, vector<16x128xf32>
    %c0_11 = arith.constant 0 : index
    %c0_12 = arith.constant 0 : index
    %18 = vector.load %arg5[%c0_11, %c0_12] : memref<128x128xf32, #tpu.memory_space<vmem>>, vector<128x128xf32>
    %cst_13 = arith.constant dense<0.000000e+00> : vector<16x128xf32>
    %19 = tpu.matmul %16, %18, %cst_13 {dimension_numbers = #tpu.dot_dimension_numbers<[1], [0], [0], [1], [0, 0, 1, 1], [], []>, precision = #tpu.contract_precision<fp32>} : vector<16x128xf32>, vector<128x128xf32>, vector<16x128xf32> -> vector<16x128xf32>
    %20 = arith.addf %17, %19 : vector<16x128xf32>
    %c0_14 = arith.constant 0 : index
    %c0_15 = arith.constant 0 : index
    %21 = vector.load %arg8[%c0_14, %c0_15] : memref<16x128xf32, #tpu.memory_space<vmem>>, vector<16x128xf32>
    tpu.vector_store %arg8[%c0_14, %c0_15], %20 {strides = array<i32>} : memref<16x128xf32, #tpu.memory_space<vmem>>, vector<16x128xf32>,
    %c0_i32_16 = arith.constant 0 : i32
    %22 = arith.cmpi eq, %arg1, %c0_i32_16 : i32
    %23 = arith.extui %22 : i1 to i32
    %c0_i32_17 = arith.constant 0 : i32
    %24 = arith.cmpi ne, %23, %c0_i32_17 : i32
    scf.if %24 {
      %c0_18 = arith.constant 0 : index
      %c0_19 = arith.constant 0 : index
      %25 = vector.load %arg8[%c0_18, %c0_19] : memref<16x128xf32, #tpu.memory_space<vmem>>, vector<16x128xf32>
      %c0_20 = arith.constant 0 : index
      %c0_21 = arith.constant 0 : index
      %26 = vector.load %arg6[%c0_20, %c0_21] : memref<1x128xf32, #tpu.memory_space<vmem>>, vector<1x128xf32>
      %27 = vector.broadcast %26 : vector<1x128xf32> to vector<16x128xf32>
      %28 = arith.addf %25, %27 : vector<16x128xf32>
      %c0_22 = arith.constant 0 : index
      %c0_23 = arith.constant 0 : index
      %29 = vector.load %arg7[%c0_22, %c0_23] : memref<16x128xf32, #tpu.memory_space<vmem>>, vector<16x128xf32>
      tpu.vector_store %arg7[%c0_22, %c0_23], %28 {strides = array<i32>} : memref<16x128xf32, #tpu.memory_space<vmem>>, vector<16x128xf32>,
    } else {
    }
    return
  }
  func.func @transform_0(%arg0: i32, %arg1: i32) -> (i32, i32) {
    %c0_i32 = arith.constant 0 : i32
    %c0_i32_0 = arith.constant 0 : i32
    return %arg0, %c0_i32 : i32, i32
  }
  func.func @transform_1(%arg0: i32, %arg1: i32) -> (i32, i32) {
    %c0_i32 = arith.constant 0 : i32
    %c0_i32_0 = arith.constant 0 : i32
    return %c0_i32, %arg1 : i32, i32
  }
  func.func @transform_2(%arg0: i32, %arg1: i32) -> (i32, i32) {
    %c0_i32 = arith.constant 0 : i32
    %c0_i32_0 = arith.constant 0 : i32
    return %c0_i32, %arg1 : i32, i32
  }
  func.func @transform_3(%arg0: i32, %arg1: i32) -> (i32, i32) {
    %c0_i32 = arith.constant 0 : i32
    %c0_i32_0 = arith.constant 0 : i32
    return %arg1, %c0_i32 : i32, i32
  }
  func.func @transform_4(%arg0: i32, %arg1: i32) -> (i32, i32) {
    %c0_i32 = arith.constant 0 : i32
    %c0_i32_0 = arith.constant 0 : i32
    %c0_i32_1 = arith.constant 0 : i32
    return %c0_i32, %c0_i32_0 : i32, i32
  }
  func.func @transform_5(%arg0: i32, %arg1: i32) -> (i32, i32) {
    %c0_i32 = arith.constant 0 : i32
    %c0_i32_0 = arith.constant 0 : i32
    return %arg0, %c0_i32 : i32, i32
  }
}

</mosaic_0001>

<llo_original>
// kernel: tpu_custom_call.1
$region0: #{tpu_custom_call.1}
  #allocation0 [shape = 'u32[]', space=smem, size = 0x4, offset = 0x4, fixed_abs, tag = 'smem constant byte address 0x4 - core index']
  #allocation1 [shape = 'u32[144,128]{1,0:T(1,128)}', space=vmem, size = 0x12000, scoped, tag = 'internal scratch']
  #allocation2 [shape = 'f32[16,128]{1,0:T(8,128)}', space=vmem, size = 0x2000, scoped, tag = 'scratch operand']
  %s0 = inlined_call_operand.hbm [shape: f32[16,128], index: 0, kind: input, shape index: {}]
  %s1 = inlined_call_operand.hbm [shape: f32[128,128], index: 1, kind: input, shape index: {}]
  %s2 = inlined_call_operand.vmem [shape: f32[1,128], index: 2, kind: input, shape index: {}]
  %s3 = inlined_call_operand.hbm [shape: f32[128,128], index: 3, kind: input, shape index: {}]
  %s4 = inlined_call_operand.vmem [shape: f32[1,128], index: 4, kind: input, shape index: {}]
  %s5 = inlined_call_operand.hbm [shape: f32[16,128], index: 5, kind: output, shape index: {}]
  %s6 = sld [smem:[#allocation0]]
  $region50: #{tpu_custom_call.1} parent=0
    _
  %s8 = ssub.s32 1, %s6
  %s9 = scalar_select 0, %s8, %s6
  $region1: #{tpu_custom_call.1} parent=0
    #allocation3 [shape = 'u8[8192]{0}', space=vmem, size = 0x2000, scoped, tag = 'input window, operand 0, single buffered']
    #allocation4 [shape = 's32[1]{0}', space=sflag, size = 0x4, scoped, tag = 'scoped memory for tpu_custom_call.1']
    #allocation5 [shape = 's32[1]{0}', space=sflag, size = 0x4, scoped, tag = 'scoped memory for tpu_custom_call.1']
    #allocation6 [shape = 'u8[65536]{0}', space=vmem, size = 0x10000, scoped, tag = 'input window, operand 1, single buffered']
    #allocation7 [shape = 's32[1]{0}', space=sflag, size = 0x4, scoped, tag = 'scoped memory for tpu_custom_call.1']
    #allocation8 [shape = 'u8[65536]{0}', space=vmem, size = 0x10000, scoped, tag = 'input window, operand 3, single buffered']
    #allocation9 [shape = 'u8[8192]{0}', space=vmem, size = 0x2000, scoped, tag = 'output window, operand 0, single buffered']
    %10 = vsyncpa [#allocation4], 0
    %11 = vsyncpa [#allocation7], 0
    %12 = vsyncpa [#allocation5], 0
    // Predicated region
    $region2: #{tpu_custom_call.1} parent=1 // pred_check
      _
    $region3: #{tpu_custom_call.1} parent=1 // pred_check_branch
      %14 = sbr.rel (0) target = $region5
    $region4: #{tpu_custom_call.1} parent=1 // pred_region
      %s16 = ssub.s32 256, 256
      %17 = vsyncadd [#allocation4], %s16
      %s18 = sshll.u32 [#allocation3], 4
      %s19 = int_to_ptr.vmem [resolvable:$true] %s18
      %24 = dma.hbm_to_vmem [thread:$0]  %s0, 256, %s19, [#allocation4], 128, 128, 8
    $region5: #{tpu_custom_call.1} parent=1 // pred_fallthru
      _
    // Predicated region
    $region6: #{tpu_custom_call.1} parent=1 // pred_check
      _
    $region7: #{tpu_custom_call.1} parent=1 // pred_check_branch
      %26 = sbr.rel (0) target = $region9
    $region8: #{tpu_custom_call.1} parent=1 // pred_region
      %s28 = ssub.s32 2048, 2048
      %29 = vsyncadd [#allocation7], %s28
      %s30 = sshll.u32 [#allocation6], 4
      %s31 = int_to_ptr.vmem [resolvable:$true] %s30
      %36 = dma.hbm_to_vmem [thread:$0]  %s1, 2048, %s31, [#allocation7], 128, 128, 8
    $region9: #{tpu_custom_call.1} parent=1 // pred_fallthru
      _
    // Predicated region
    $region10: #{tpu_custom_call.1} parent=1 // pred_check
      _
    $region11: #{tpu_custom_call.1} parent=1 // pred_check_branch
      %38 = sbr.rel (0) target = $region13
    $region12: #{tpu_custom_call.1} parent=1 // pred_region
      _
    $region13: #{tpu_custom_call.1} parent=1 // pred_fallthru
      _
    // Predicated region
    $region14: #{tpu_custom_call.1} parent=1 // pred_check
      _
    $region15: #{tpu_custom_call.1} parent=1 // pred_check_branch
      %40 = sbr.rel (0) target = $region17
    $region16: #{tpu_custom_call.1} parent=1 // pred_region
      %s42 = ssub.s32 2048, 2048
      %43 = vsyncadd [#allocation7], %s42
      %s44 = sshll.u32 [#allocation8], 4
      %s45 = int_to_ptr.vmem [resolvable:$true] %s44
      %50 = dma.hbm_to_vmem [thread:$0]  %s3, 2048, %s45, [#allocation7], 128, 128, 8
    $region17: #{tpu_custom_call.1} parent=1 // pred_fallthru
      _
    // Predicated region
    $region18: #{tpu_custom_call.1} parent=1 // pred_check
      _
    $region19: #{tpu_custom_call.1} parent=1 // pred_check_branch
      %52 = sbr.rel (0) target = $region21
    $region20: #{tpu_custom_call.1} parent=1 // pred_region
      _
    $region21: #{tpu_custom_call.1} parent=1 // pred_fallthru
      _
    // Predicated region
    $region22: #{tpu_custom_call.1} parent=1 // pred_check
      _
    $region23: #{tpu_custom_call.1} parent=1 // pred_check_branch
      %54 = sbr.rel (0) target = $region25
    $region24: #{tpu_custom_call.1} parent=1 // pred_region
      %55 = dma.done [#allocation4], 256
    $region25: #{tpu_custom_call.1} parent=1 // pred_fallthru
      _
    // Predicated region
    $region26: #{tpu_custom_call.1} parent=1 // pred_check
      _
    $region27: #{tpu_custom_call.1} parent=1 // pred_check_branch
      %57 = sbr.rel (0) target = $region29
    $region28: #{tpu_custom_call.1} parent=1 // pred_region
      %58 = dma.done [#allocation7], 2048
    $region29: #{tpu_custom_call.1} parent=1 // pred_fallthru
      _
    // Predicated region
    $region30: #{tpu_custom_call.1} parent=1 // pred_check
      _
    $region31: #{tpu_custom_call.1} parent=1 // pred_check_branch
      %60 = sbr.rel (0) target = $region33
    $region32: #{tpu_custom_call.1} parent=1 // pred_region
      %61 = dma.done [#allocation7], 2048
    $region33: #{tpu_custom_call.1} parent=1 // pred_fallthru
      _
    %p62 = scmp.eq.s32.totalorder 0, 0
    // Predicated region
    $region34: #{tpu_custom_call.1} parent=1 // pred_check
      %p63 = pneg %p62
    $region35: #{tpu_custom_call.1} parent=1 // pred_check_branch
      %65 = sbr.rel (%p63) target = $region37
    $region36: #{tpu_custom_call.1} parent=1 // pred_region
      %66 = vst [vmem:[#allocation2] sm:$0xff] 0.0
      %67 = vst [vmem:[#allocation2 + $0x8] sm:$0xff] 0.0
    $region37: #{tpu_custom_call.1} parent=1 // pred_fallthru
      _
    %v68 = vld [vmem:[#allocation3] sm:$0xff]
    %v69 = vld [vmem:[#allocation3 + $0x8] sm:$0xff]
    %v70 = vld [vmem:[#allocation6] sm:$0xff]
    %v71 = vld [vmem:[#allocation6 + $0x8] sm:$0xff]
    %v72 = vld [vmem:[#allocation6 + $0x10] sm:$0xff]
    %v73 = vld [vmem:[#allocation6 + $0x18] sm:$0xff]
    %v74 = vld [vmem:[#allocation6 + $0x20] sm:$0xff]
    %v75 = vld [vmem:[#allocation6 + $0x28] sm:$0xff]
    %v76 = vld [vmem:[#allocation6 + $0x30] sm:$0xff]
    %v77 = vld [vmem:[#allocation6 + $0x38] sm:$0xff]
    %v78 = vld [vmem:[#allocation6 + $0x40] sm:$0xff]
    %v79 = vld [vmem:[#allocation6 + $0x48] sm:$0xff]
    %v80 = vld [vmem:[#allocation6 + $0x50] sm:$0xff]
    %v81 = vld [vmem:[#allocation6 + $0x58] sm:$0xff]
    %v82 = vld [vmem:[#allocation6 + $0x60] sm:$0xff]
    %v83 = vld [vmem:[#allocation6 + $0x68] sm:$0xff]
    %v84 = vld [vmem:[#allocation6 + $0x70] sm:$0xff]
    %v85 = vld [vmem:[#allocation6 + $0x78] sm:$0xff]
    %v86 = vld [vmem:[%s2] sm:$0x1]
    %v88 = vlaneseq
    %v89 = vshrl.u32 %v88, 7
    %v90 = vsub.s32 0, %v89
    %v91 = vrot.slane %v86, %v90
    %93 = vmatprep.subr.mxu0 0.0
    %v94 = vand.u32 %v70, 4294901760
    %95 = vmatpush1.msra.mxu0 %v94
    %96 = vmatprep.subr.mxu0 0.0
    %v97 = vand.u32 %v71, 4294901760
    %98 = vmatpush1.msra.mxu0 %v97
    %99 = vmatprep.subr.mxu0 0.0
    %v100 = vand.u32 %v72, 4294901760
    %101 = vmatpush1.msra.mxu0 %v100
    %102 = vmatprep.subr.mxu0 0.0
    %v103 = vand.u32 %v73, 4294901760
    %104 = vmatpush1.msra.mxu0 %v103
    %105 = vmatprep.subr.mxu0 0.0
    %v106 = vand.u32 %v74, 4294901760
    %107 = vmatpush1.msra.mxu0 %v106
    %108 = vmatprep.subr.mxu0 0.0
    %v109 = vand.u32 %v75, 4294901760
    %110 = vmatpush1.msra.mxu0 %v109
    %111 = vmatprep.subr.mxu0 0.0
    %v112 = vand.u32 %v76, 4294901760
    %113 = vmatpush1.msra.mxu0 %v112
    %114 = vmatprep.subr.mxu0 0.0
    %v115 = vand.u32 %v77, 4294901760
    %116 = vmatpush1.msra.mxu0 %v115
    %117 = vmatprep.subr.mxu0 0.0
    %v118 = vand.u32 %v78, 4294901760
    %119 = vmatpush1.msra.mxu0 %v118
    %120 = vmatprep.subr.mxu0 0.0
    %v121 = vand.u32 %v79, 4294901760
    %122 = vmatpush1.msra.mxu0 %v121
    %123 = vmatprep.subr.mxu0 0.0
    %v124 = vand.u32 %v80, 4294901760
    %125 = vmatpush1.msra.mxu0 %v124
    %126 = vmatprep.subr.mxu0 0.0
    %v127 = vand.u32 %v81, 4294901760
    %128 = vmatpush1.msra.mxu0 %v127
    %129 = vmatprep.subr.mxu0 0.0
    %v130 = vand.u32 %v82, 4294901760
    %131 = vmatpush1.msra.mxu0 %v130
    %132 = vmatprep.subr.mxu0 0.0
    %v133 = vand.u32 %v83, 4294901760
    %134 = vmatpush1.msra.mxu0 %v133
    %135 = vmatprep.subr.mxu0 0.0
    %v136 = vand.u32 %v84, 4294901760
    %137 = vmatpush1.msra.mxu0 %v136
    %138 = vmatprep.subr.mxu0 0.0
    %v139 = vand.u32 %v85, 4294901760
    %140 = vmatpush1.msra.mxu0 %v139
    %141 = vmatprep.subr.mxu0 0.0
    %142 = vmatpush1.msra.mxu0 0.0
    %143 = vmatprep.subr.mxu0 0.0
    %144 = vmatpush1.msra.mxu0 0.0
    %145 = vmatprep.subr.mxu0 0.0
    %146 = vmatpush1.msra.mxu0 0.0
    %147 = vmatprep.subr.mxu0 0.0
    %148 = vmatpush1.msra.mxu0 0.0
    %149 = vmatprep.subr.mxu0 0.0
    %150 = vmatpush1.msra.mxu0 0.0
    %151 = vmatprep.subr.mxu0 0.0
    %152 = vmatpush1.msra.mxu0 0.0
    %153 = vmatprep.subr.mxu0 0.0
    %154 = vmatpush1.msra.mxu0 0.0
    %155 = vmatprep.subr.mxu0 0.0
    %156 = vmatpush1.msra.mxu0 0.0
    %157 = vmatprep.subr.mxu0 0.0
    %158 = vmatpush1.msra.mxu0 0.0
    %159 = vmatprep.subr.mxu0 0.0
    %160 = vmatpush1.msra.mxu0 0.0
    %161 = vmatprep.subr.mxu0 0.0
    %162 = vmatpush1.msra.mxu0 0.0
    %163 = vmatprep.subr.mxu0 0.0
    %164 = vmatpush1.msra.mxu0 0.0
    %165 = vmatprep.subr.mxu0 0.0
    %166 = vmatpush1.msra.mxu0 0.0
    %167 = vmatprep.subr.mxu0 0.0
    %168 = vmatpush1.msra.mxu0 0.0
    %169 = vmatprep.subr.mxu0 0.0
    %170 = vmatpush1.msra.mxu0 0.0
    %171 = vmatprep.subr.mxu0 0.0
    %172 = vmatpush1.msra.mxu0 0.0
    %173 = vmatprep.mubr.f32.mxu0 0.0
    %v174 = vand.u32 %v68, 4294901760
    %v175 = vsub.f32 %v68, %v174
    %v176 = vand.u32 %v175, 4294901760
    %v177 = vsub.f32 %v175, %v176
    %v178 = vand.u32 %v177, 4294901760
    %179 = vmatmul.mubr.f32.gmra.mrb[0].mxu0 %v178
    %v180 = vpop.f32.mrb[0].mxu0
    %v181 = vadd.f32 %v91, %v180
    %v182 = vpop.f32.mrb[0].mxu0
    %183 = vmatprep.mubr.f32.mxu0 0.0
    %v184 = vand.u32 %v69, 4294901760
    %v185 = vsub.f32 %v69, %v184
    %v186 = vand.u32 %v185, 4294901760
    %v187 = vsub.f32 %v185, %v186
    %v188 = vand.u32 %v187, 4294901760
    %189 = vmatmul.mubr.f32.gmra.mrb[0].mxu0 %v188
    %v190 = vpop.f32.mrb[0].mxu0
    %v191 = vadd.f32 %v91, %v190
    %v192 = vpop.f32.mrb[0].mxu0
    %193 = vdwg.mxu0
    %194 = vmatprep.subr.mxu0 0.0
    %v195 = vand.u32 %v70, 4294901760
    %v196 = vsub.f32 %v70, %v195
    %v197 = vand.u32 %v196, 4294901760
    %v198 = vsub.f32 %v196, %v197
    %v199 = vand.u32 %v198, 4294901760
    %200 = vmatpush1.msra.mxu0 %v199
    %201 = vmatprep.subr.mxu0 0.0
    %v202 = vand.u32 %v71, 4294901760
    %v203 = vsub.f32 %v71, %v202
    %v204 = vand.u32 %v203, 4294901760
    %v205 = vsub.f32 %v203, %v204
    %v206 = vand.u32 %v205, 4294901760
    %207 = vmatpush1.msra.mxu0 %v206
    %208 = vmatprep.subr.mxu0 0.0
    %v209 = vand.u32 %v72, 4294901760
    %v210 = vsub.f32 %v72, %v209
    %v211 = vand.u32 %v210, 4294901760
    %v212 = vsub.f32 %v210, %v211
    %v213 = vand.u32 %v212, 4294901760
    %214 = vmatpush1.msra.mxu0 %v213
    %215 = vmatprep.subr.mxu0 0.0
    %v216 = vand.u32 %v73, 4294901760
    %v217 = vsub.f32 %v73, %v216
    %v218 = vand.u32 %v217, 4294901760
    %v219 = vsub.f32 %v217, %v218
    %v220 = vand.u32 %v219, 4294901760
    %221 = vmatpush1.msra.mxu0 %v220
    %222 = vmatprep.subr.mxu0 0.0
    %v223 = vand.u32 %v74, 4294901760
    %v224 = vsub.f32 %v74, %v223
    %v225 = vand.u32 %v224, 4294901760
    %v226 = vsub.f32 %v224, %v225
    %v227 = vand.u32 %v226, 4294901760
    %228 = vmatpush1.msra.mxu0 %v227
    %229 = vmatprep.subr.mxu0 0.0
    %v230 = vand.u32 %v75, 4294901760
    %v231 = vsub.f32 %v75, %v230
    %v232 = vand.u32 %v231, 4294901760
    %v233 = vsub.f32 %v231, %v232
    %v234 = vand.u32 %v233, 4294901760
    %235 = vmatpush1.msra.mxu0 %v234
    %236 = vmatprep.subr.mxu0 0.0
    %v237 = vand.u32 %v76, 4294901760
    %v238 = vsub.f32 %v76, %v237
    %v239 = vand.u32 %v238, 4294901760
    %v240 = vsub.f32 %v238, %v239
    %v241 = vand.u32 %v240, 4294901760
    %242 = vmatpush1.msra.mxu0 %v241
    %243 = vmatprep.subr.mxu0 0.0
    %v244 = vand.u32 %v77, 4294901760
    %v245 = vsub.f32 %v77, %v244
    %v246 = vand.u32 %v245, 4294901760
    %v247 = vsub.f32 %v245, %v246
    %v248 = vand.u32 %v247, 4294901760
    %249 = vmatpush1.msra.mxu0 %v248
    %250 = vmatprep.subr.mxu0 0.0
    %v251 = vand.u32 %v78, 4294901760
    %v252 = vsub.f32 %v78, %v251
    %v253 = vand.u32 %v252, 4294901760
    %v254 = vsub.f32 %v252, %v253
    %v255 = vand.u32 %v254, 4294901760
    %256 = vmatpush1.msra.mxu0 %v255
    %257 = vmatprep.subr.mxu0 0.0
    %v258 = vand.u32 %v79, 4294901760
    %v259 = vsub.f32 %v79, %v258
    %v260 = vand.u32 %v259, 4294901760
    %v261 = vsub.f32 %v259, %v260
    %v262 = vand.u32 %v261, 4294901760
    %263 = vmatpush1.msra.mxu0 %v262
    %264 = vmatprep.subr.mxu0 0.0
    %v265 = vand.u32 %v80, 4294901760
    %v266 = vsub.f32 %v80, %v265
    %v267 = vand.u32 %v266, 4294901760
    %v268 = vsub.f32 %v266, %v267
    %v269 = vand.u32 %v268, 4294901760
    %270 = vmatpush1.msra.mxu0 %v269
    %271 = vmatprep.subr.mxu0 0.0
    %v272 = vand.u32 %v81, 4294901760
    %v273 = vsub.f32 %v81, %v272
    %v274 = vand.u32 %v273, 4294901760
    %v275 = vsub.f32 %v273, %v274
    %v276 = vand.u32 %v275, 4294901760
    %277 = vmatpush1.msra.mxu0 %v276
    %278 = vmatprep.subr.mxu0 0.0
    %v279 = vand.u32 %v82, 4294901760
    %v280 = vsub.f32 %v82, %v279
    %v281 = vand.u32 %v280, 4294901760
    %v282 = vsub.f32 %v280, %v281
    %v283 = vand.u32 %v282, 4294901760
    %284 = vmatpush1.msra.mxu0 %v283
    %285 = vmatprep.subr.mxu0 0.0
    %v286 = vand.u32 %v83, 4294901760
    %v287 = vsub.f32 %v83, %v286
    %v288 = vand.u32 %v287, 4294901760
    %v289 = vsub.f32 %v287, %v288
    %v290 = vand.u32 %v289, 4294901760
    %291 = vmatpush1.msra.mxu0 %v290
    %292 = vmatprep.subr.mxu0 0.0
    %v293 = vand.u32 %v84, 4294901760
    %v294 = vsub.f32 %v84, %v293
    %v295 = vand.u32 %v294, 4294901760
    %v296 = vsub.f32 %v294, %v295
    %v297 = vand.u32 %v296, 4294901760
    %298 = vmatpush1.msra.mxu0 %v297
    %299 = vmatprep.subr.mxu0 0.0
    %v300 = vand.u32 %v85, 4294901760
    %v301 = vsub.f32 %v85, %v300
    %v302 = vand.u32 %v301, 4294901760
    %v303 = vsub.f32 %v301, %v302
    %v304 = vand.u32 %v303, 4294901760
    %305 = vmatpush1.msra.mxu0 %v304
    %306 = vmatprep.subr.mxu0 0.0
    %307 = vmatpush1.msra.mxu0 0.0
    %308 = vmatprep.subr.mxu0 0.0
    %309 = vmatpush1.msra.mxu0 0.0
    %310 = vmatprep.subr.mxu0 0.0
    %311 = vmatpush1.msra.mxu0 0.0
    %312 = vmatprep.subr.mxu0 0.0
    %313 = vmatpush1.msra.mxu0 0.0
    %314 = vmatprep.subr.mxu0 0.0
    %315 = vmatpush1.msra.mxu0 0.0
    %316 = vmatprep.subr.mxu0 0.0
    %317 = vmatpush1.msra.mxu0 0.0
    %318 = vmatprep.subr.mxu0 0.0
    %319 = vmatpush1.msra.mxu0 0.0
    %320 = vmatprep.subr.mxu0 0.0
    %321 = vmatpush1.msra.mxu0 0.0
    %322 = vmatprep.subr.mxu0 0.0
    %323 = vmatpush1.msra.mxu0 0.0
    %324 = vmatprep.subr.mxu0 0.0
    %325 = vmatpush1.msra.mxu0 0.0
    %326 = vmatprep.subr.mxu0 0.0
    %327 = vmatpush1.msra.mxu0 0.0
    %328 = vmatprep.subr.mxu0 0.0
    %329 = vmatpush1.msra.mxu0 0.0
    %330 = vmatprep.subr.mxu0 0.0
    %331 = vmatpush1.msra.mxu0 0.0
    %332 = vmatprep.subr.mxu0 0.0
    %333 = vmatpush1.msra.mxu0 0.0
    %334 = vmatprep.subr.mxu0 0.0
    %335 = vmatpush1.msra.mxu0 0.0
    %336 = vmatprep.subr.mxu0 0.0
    %337 = vmatpush1.msra.mxu0 0.0
    %338 = vmatprep.mubr.f32.mxu0 0.0
    %v339 = vand.u32 %v68, 4294901760
    %340 = vmatmul.mubr.f32.gmra.mrb[0].mxu0 %v339
    %v341 = vpop.f32.mrb[0].mxu0
    %v342 = vadd.f32 %v181, %v341
    %v343 = vpop.f32.mrb[0].mxu0
    %344 = vmatprep.mubr.f32.mxu0 0.0
    %v345 = vand.u32 %v69, 4294901760
    %346 = vmatmul.mubr.f32.gmra.mrb[0].mxu0 %v345
    %v347 = vpop.f32.mrb[0].mxu0
    %v348 = vadd.f32 %v191, %v347
    %v349 = vpop.f32.mrb[0].mxu0
    %350 = vdwg.mxu0
    %351 = vmatprep.subr.mxu0 0.0
    %v352 = vand.u32 %v70, 4294901760
    %v353 = vsub.f32 %v70, %v352
    %354 = vmatpush1.msra.mxu0 %v353
    %355 = vmatprep.subr.mxu0 0.0
    %v356 = vand.u32 %v71, 4294901760
    %v357 = vsub.f32 %v71, %v356
    %358 = vmatpush1.msra.mxu0 %v357
    %359 = vmatprep.subr.mxu0 0.0
    %v360 = vand.u32 %v72, 4294901760
    %v361 = vsub.f32 %v72, %v360
    %362 = vmatpush1.msra.mxu0 %v361
    %363 = vmatprep.subr.mxu0 0.0
    %v364 = vand.u32 %v73, 4294901760
    %v365 = vsub.f32 %v73, %v364
    %366 = vmatpush1.msra.mxu0 %v365
    %367 = vmatprep.subr.mxu0 0.0
    %v368 = vand.u32 %v74, 4294901760
    %v369 = vsub.f32 %v74, %v368
    %370 = vmatpush1.msra.mxu0 %v369
    %371 = vmatprep.subr.mxu0 0.0
    %v372 = vand.u32 %v75, 4294901760
    %v373 = vsub.f32 %v75, %v372
    %374 = vmatpush1.msra.mxu0 %v373
    %375 = vmatprep.subr.mxu0 0.0
    %v376 = vand.u32 %v76, 4294901760
    %v377 = vsub.f32 %v76, %v376
    %378 = vmatpush1.msra.mxu0 %v377
    %379 = vmatprep.subr.mxu0 0.0
    %v380 = vand.u32 %v77, 4294901760
    %v381 = vsub.f32 %v77, %v380
    %382 = vmatpush1.msra.mxu0 %v381
    %383 = vmatprep.subr.mxu0 0.0
    %v384 = vand.u32 %v78, 4294901760
    %v385 = vsub.f32 %v78, %v384
    %386 = vmatpush1.msra.mxu0 %v385
    %387 = vmatprep.subr.mxu0 0.0
    %v388 = vand.u32 %v79, 4294901760
    %v389 = vsub.f32 %v79, %v388
    %390 = vmatpush1.msra.mxu0 %v389
    %391 = vmatprep.subr.mxu0 0.0
    %v392 = vand.u32 %v80, 4294901760
    %v393 = vsub.f32 %v80, %v392
    %394 = vmatpush1.msra.mxu0 %v393
    %395 = vmatprep.subr.mxu0 0.0
    %v396 = vand.u32 %v81, 4294901760
    %v397 = vsub.f32 %v81, %v396
    %398 = vmatpush1.msra.mxu0 %v397
    %399 = vmatprep.subr.mxu0 0.0
    %v400 = vand.u32 %v82, 4294901760
    %v401 = vsub.f32 %v82, %v400
    %402 = vmatpush1.msra.mxu0 %v401
    %403 = vmatprep.subr.mxu0 0.0
    %v404 = vand.u32 %v83, 4294901760
    %v405 = vsub.f32 %v83, %v404
    %406 = vmatpush1.msra.mxu0 %v405
    %407 = vmatprep.subr.mxu0 0.0
    %v408 = vand.u32 %v84, 4294901760
    %v409 = vsub.f32 %v84, %v408
    %410 = vmatpush1.msra.mxu0 %v409
    %411 = vmatprep.subr.mxu0 0.0
    %v412 = vand.u32 %v85, 4294901760
    %v413 = vsub.f32 %v85, %v412
    %414 = vmatpush1.msra.mxu0 %v413
    %415 = vmatprep.subr.mxu0 0.0
    %416 = vmatpush1.msra.mxu0 0.0
    %417 = vmatprep.subr.mxu0 0.0
    %418 = vmatpush1.msra.mxu0 0.0
    %419 = vmatprep.subr.mxu0 0.0
    %420 = vmatpush1.msra.mxu0 0.0
    %421 = vmatprep.subr.mxu0 0.0
    %422 = vmatpush1.msra.mxu0 0.0
    %423 = vmatprep.subr.mxu0 0.0
    %424 = vmatpush1.msra.mxu0 0.0
    %425 = vmatprep.subr.mxu0 0.0
    %426 = vmatpush1.msra.mxu0 0.0
    %427 = vmatprep.subr.mxu0 0.0
    %428 = vmatpush1.msra.mxu0 0.0
    %429 = vmatprep.subr.mxu0 0.0
    %430 = vmatpush1.msra.mxu0 0.0
    %431 = vmatprep.subr.mxu0 0.0
    %432 = vmatpush1.msra.mxu0 0.0
    %433 = vmatprep.subr.mxu0 0.0
    %434 = vmatpush1.msra.mxu0 0.0
    %435 = vmatprep.subr.mxu0 0.0
    %436 = vmatpush1.msra.mxu0 0.0
    %437 = vmatprep.subr.mxu0 0.0
    %438 = vmatpush1.msra.mxu0 0.0
    %439 = vmatprep.subr.mxu0 0.0
    %440 = vmatpush1.msra.mxu0 0.0
    %441 = vmatprep.subr.mxu0 0.0
    %442 = vmatpush1.msra.mxu0 0.0
    %443 = vmatprep.subr.mxu0 0.0
    %444 = vmatpush1.msra.mxu0 0.0
    %445 = vmatprep.subr.mxu0 0.0
    %446 = vmatpush1.msra.mxu0 0.0
    %447 = vmatprep.mubr.f32.mxu0 0.0
    %v448 = vand.u32 %v68, 4294901760
    %v449 = vsub.f32 %v68, %v448
    %450 = vmatmul.mubr.f32.gmra.mrb[0].mxu0 %v449
    %v451 = vpop.f32.mrb[0].mxu0
    %v452 = vadd.f32 %v342, %v451
    %v453 = vpop.f32.mrb[0].mxu0
    %454 = vmatprep.mubr.f32.mxu0 0.0
    %v455 = vand.u32 %v69, 4294901760
    %v456 = vsub.f32 %v69, %v455
    %457 = vmatmul.mubr.f32.gmra.mrb[0].mxu0 %v456
    %v458 = vpop.f32.mrb[0].mxu0
    %v459 = vadd.f32 %v348, %v458
    %v460 = vpop.f32.mrb[0].mxu0
    %461 = vdwg.mxu0
    %462 = vmatprep.subr.mxu0 0.0
    %v463 = vand.u32 %v70, 4294901760
    %464 = vmatpush1.msra.mxu0 %v463
    %465 = vmatprep.subr.mxu0 0.0
    %v466 = vand.u32 %v71, 4294901760
    %467 = vmatpush1.msra.mxu0 %v466
    %468 = vmatprep.subr.mxu0 0.0
    %v469 = vand.u32 %v72, 4294901760
    %470 = vmatpush1.msra.mxu0 %v469
    %471 = vmatprep.subr.mxu0 0.0
    %v472 = vand.u32 %v73, 4294901760
    %473 = vmatpush1.msra.mxu0 %v472
    %474 = vmatprep.subr.mxu0 0.0
    %v475 = vand.u32 %v74, 4294901760
    %476 = vmatpush1.msra.mxu0 %v475
    %477 = vmatprep.subr.mxu0 0.0
    %v478 = vand.u32 %v75, 4294901760
    %479 = vmatpush1.msra.mxu0 %v478
    %480 = vmatprep.subr.mxu0 0.0
    %v481 = vand.u32 %v76, 4294901760
    %482 = vmatpush1.msra.mxu0 %v481
    %483 = vmatprep.subr.mxu0 0.0
    %v484 = vand.u32 %v77, 4294901760
    %485 = vmatpush1.msra.mxu0 %v484
    %486 = vmatprep.subr.mxu0 0.0
    %v487 = vand.u32 %v78, 4294901760
    %488 = vmatpush1.msra.mxu0 %v487
    %489 = vmatprep.subr.mxu0 0.0
    %v490 = vand.u32 %v79, 4294901760
    %491 = vmatpush1.msra.mxu0 %v490
    %492 = vmatprep.subr.mxu0 0.0
    %v493 = vand.u32 %v80, 4294901760
    %494 = vmatpush1.msra.mxu0 %v493
    %495 = vmatprep.subr.mxu0 0.0
    %v496 = vand.u32 %v81, 4294901760
    %497 = vmatpush1.msra.mxu0 %v496
    %498 = vmatprep.subr.mxu0 0.0
    %v499 = vand.u32 %v82, 4294901760
    %500 = vmatpush1.msra.mxu0 %v499
    %501 = vmatprep.subr.mxu0 0.0
    %v502 = vand.u32 %v83, 4294901760
    %503 = vmatpush1.msra.mxu0 %v502
    %504 = vmatprep.subr.mxu0 0.0
    %v505 = vand.u32 %v84, 4294901760
    %506 = vmatpush1.msra.mxu0 %v505
    %507 = vmatprep.subr.mxu0 0.0
    %v508 = vand.u32 %v85, 4294901760
    %509 = vmatpush1.msra.mxu0 %v508
    %510 = vmatprep.subr.mxu0 0.0
    %511 = vmatpush1.msra.mxu0 0.0
    %512 = vmatprep.subr.mxu0 0.0
    %513 = vmatpush1.msra.mxu0 0.0
    %514 = vmatprep.subr.mxu0 0.0
    %515 = vmatpush1.msra.mxu0 0.0
    %516 = vmatprep.subr.mxu0 0.0
    %517 = vmatpush1.msra.mxu0 0.0
    %518 = vmatprep.subr.mxu0 0.0
    %519 = vmatpush1.msra.mxu0 0.0
    %520 = vmatprep.subr.mxu0 0.0
    %521 = vmatpush1.msra.mxu0 0.0
    %522 = vmatprep.subr.mxu0 0.0
    %523 = vmatpush1.msra.mxu0 0.0
    %524 = vmatprep.subr.mxu0 0.0
    %525 = vmatpush1.msra.mxu0 0.0
    %526 = vmatprep.subr.mxu0 0.0
    %527 = vmatpush1.msra.mxu0 0.0
    %528 = vmatprep.subr.mxu0 0.0
    %529 = vmatpush1.msra.mxu0 0.0
    %530 = vmatprep.subr.mxu0 0.0
    %531 = vmatpush1.msra.mxu0 0.0
    %532 = vmatprep.subr.mxu0 0.0
    %533 = vmatpush1.msra.mxu0 0.0
    %534 = vmatprep.subr.mxu0 0.0
    %535 = vmatpush1.msra.mxu0 0.0
    %536 = vmatprep.subr.mxu0 0.0
    %537 = vmatpush1.msra.mxu0 0.0
    %538 = vmatprep.subr.mxu0 0.0
    %539 = vmatpush1.msra.mxu0 0.0
    %540 = vmatprep.subr.mxu0 0.0
    %541 = vmatpush1.msra.mxu0 0.0
    %542 = vmatprep.mubr.f32.mxu0 0.0
    %v543 = vand.u32 %v68, 4294901760
    %v544 = vsub.f32 %v68, %v543
    %v545 = vand.u32 %v544, 4294901760
    %546 = vmatmul.mubr.f32.gmra.mrb[0].mxu0 %v545
    %v547 = vpop.f32.mrb[0].mxu0
    %v548 = vadd.f32 %v452, %v547
    %v549 = vpop.f32.mrb[0].mxu0
    %550 = vmatprep.mubr.f32.mxu0 0.0
    %v551 = vand.u32 %v69, 4294901760
    %v552 = vsub.f32 %v69, %v551
    %v553 = vand.u32 %v552, 4294901760
    %554 = vmatmul.mubr.f32.gmra.mrb[0].mxu0 %v553
    %v555 = vpop.f32.mrb[0].mxu0
    %v556 = vadd.f32 %v459, %v555
    %v557 = vpop.f32.mrb[0].mxu0
    %558 = vdwg.mxu0
    %559 = vmatprep.subr.mxu0 0.0
    %v560 = vand.u32 %v70, 4294901760
    %v561 = vsub.f32 %v70, %v560
    %v562 = vand.u32 %v561, 4294901760
    %563 = vmatpush1.msra.mxu0 %v562
    %564 = vmatprep.subr.mxu0 0.0
    %v565 = vand.u32 %v71, 4294901760
    %v566 = vsub.f32 %v71, %v565
    %v567 = vand.u32 %v566, 4294901760
    %568 = vmatpush1.msra.mxu0 %v567
    %569 = vmatprep.subr.mxu0 0.0
    %v570 = vand.u32 %v72, 4294901760
    %v571 = vsub.f32 %v72, %v570
    %v572 = vand.u32 %v571, 4294901760
    %573 = vmatpush1.msra.mxu0 %v572
    %574 = vmatprep.subr.mxu0 0.0
    %v575 = vand.u32 %v73, 4294901760
    %v576 = vsub.f32 %v73, %v575
    %v577 = vand.u32 %v576, 4294901760
    %578 = vmatpush1.msra.mxu0 %v577
    %579 = vmatprep.subr.mxu0 0.0
    %v580 = vand.u32 %v74, 4294901760
    %v581 = vsub.f32 %v74, %v580
    %v582 = vand.u32 %v581, 4294901760
    %583 = vmatpush1.msra.mxu0 %v582
    %584 = vmatprep.subr.mxu0 0.0
    %v585 = vand.u32 %v75, 4294901760
    %v586 = vsub.f32 %v75, %v585
    %v587 = vand.u32 %v586, 4294901760
    %588 = vmatpush1.msra.mxu0 %v587
    %589 = vmatprep.subr.mxu0 0.0
    %v590 = vand.u32 %v76, 4294901760
    %v591 = vsub.f32 %v76, %v590
    %v592 = vand.u32 %v591, 4294901760
    %593 = vmatpush1.msra.mxu0 %v592
    %594 = vmatprep.subr.mxu0 0.0
    %v595 = vand.u32 %v77, 4294901760
    %v596 = vsub.f32 %v77, %v595
    %v597 = vand.u32 %v596, 4294901760
    %598 = vmatpush1.msra.mxu0 %v597
    %599 = vmatprep.subr.mxu0 0.0
    %v600 = vand.u32 %v78, 4294901760
    %v601 = vsub.f32 %v78, %v600
    %v602 = vand.u32 %v601, 4294901760
    %603 = vmatpush1.msra.mxu0 %v602
    %604 = vmatprep.subr.mxu0 0.0
    %v605 = vand.u32 %v79, 4294901760
    %v606 = vsub.f32 %v79, %v605
    %v607 = vand.u32 %v606, 4294901760
    %608 = vmatpush1.msra.mxu0 %v607
    %609 = vmatprep.subr.mxu0 0.0
    %v610 = vand.u32 %v80, 4294901760
    %v611 = vsub.f32 %v80, %v610
    %v612 = vand.u32 %v611, 4294901760
    %613 = vmatpush1.msra.mxu0 %v612
    %614 = vmatprep.subr.mxu0 0.0
    %v615 = vand.u32 %v81, 4294901760
    %v616 = vsub.f32 %v81, %v615
    %v617 = vand.u32 %v616, 4294901760
    %618 = vmatpush1.msra.mxu0 %v617
    %619 = vmatprep.subr.mxu0 0.0
    %v620 = vand.u32 %v82, 4294901760
    %v621 = vsub.f32 %v82, %v620
    %v622 = vand.u32 %v621, 4294901760
    %623 = vmatpush1.msra.mxu0 %v622
    %624 = vmatprep.subr.mxu0 0.0
    %v625 = vand.u32 %v83, 4294901760
    %v626 = vsub.f32 %v83, %v625
    %v627 = vand.u32 %v626, 4294901760
    %628 = vmatpush1.msra.mxu0 %v627
    %629 = vmatprep.subr.mxu0 0.0
    %v630 = vand.u32 %v84, 4294901760
    %v631 = vsub.f32 %v84, %v630
    %v632 = vand.u32 %v631, 4294901760
    %633 = vmatpush1.msra.mxu0 %v632
    %634 = vmatprep.subr.mxu0 0.0
    %v635 = vand.u32 %v85, 4294901760
    %v636 = vsub.f32 %v85, %v635
    %v637 = vand.u32 %v636, 4294901760
    %638 = vmatpush1.msra.mxu0 %v637
    %639 = vmatprep.subr.mxu0 0.0
    %640 = vmatpush1.msra.mxu0 0.0
    %641 = vmatprep.subr.mxu0 0.0
    %642 = vmatpush1.msra.mxu0 0.0
    %643 = vmatprep.subr.mxu0 0.0
    %644 = vmatpush1.msra.mxu0 0.0
    %645 = vmatprep.subr.mxu0 0.0
    %646 = vmatpush1.msra.mxu0 0.0
    %647 = vmatprep.subr.mxu0 0.0
    %648 = vmatpush1.msra.mxu0 0.0
    %649 = vmatprep.subr.mxu0 0.0
    %650 = vmatpush1.msra.mxu0 0.0
    %651 = vmatprep.subr.mxu0 0.0
    %652 = vmatpush1.msra.mxu0 0.0
    %653 = vmatprep.subr.mxu0 0.0
    %654 = vmatpush1.msra.mxu0 0.0
    %655 = vmatprep.subr.mxu0 0.0
    %656 = vmatpush1.msra.mxu0 0.0
    %657 = vmatprep.subr.mxu0 0.0
    %658 = vmatpush1.msra.mxu0 0.0
    %659 = vmatprep.subr.mxu0 0.0
    %660 = vmatpush1.msra.mxu0 0.0
    %661 = vmatprep.subr.mxu0 0.0
    %662 = vmatpush1.msra.mxu0 0.0
    %663 = vmatprep.subr.mxu0 0.0
    %664 = vmatpush1.msra.mxu0 0.0
    %665 = vmatprep.subr.mxu0 0.0
    %666 = vmatpush1.msra.mxu0 0.0
    %667 = vmatprep.subr.mxu0 0.0
    %668 = vmatpush1.msra.mxu0 0.0
    %669 = vmatprep.subr.mxu0 0.0
    %670 = vmatpush1.msra.mxu0 0.0
    %671 = vmatprep.mubr.f32.mxu0 0.0
    %v672 = vand.u32 %v68, 4294901760
    %673 = vmatmul.mubr.f32.gmra.mrb[0].mxu0 %v672
    %v674 = vpop.f32.mrb[0].mxu0
    %v675 = vadd.f32 %v548, %v674
    %v676 = vpop.f32.mrb[0].mxu0
    %677 = vmatprep.mubr.f32.mxu0 0.0
    %v678 = vand.u32 %v69, 4294901760
    %679 = vmatmul.mubr.f32.gmra.mrb[0].mxu0 %v678
    %v680 = vpop.f32.mrb[0].mxu0
    %v681 = vadd.f32 %v556, %v680
    %v682 = vpop.f32.mrb[0].mxu0
    %683 = vdwg.mxu0
    %684 = vmatprep.subr.mxu0 0.0
    %v685 = vand.u32 %v70, 4294901760
    %686 = vmatpush1.msra.mxu0 %v685
    %687 = vmatprep.subr.mxu0 0.0
    %v688 = vand.u32 %v71, 4294901760
    %689 = vmatpush1.msra.mxu0 %v688
    %690 = vmatprep.subr.mxu0 0.0
    %v691 = vand.u32 %v72, 4294901760
    %692 = vmatpush1.msra.mxu0 %v691
    %693 = vmatprep.subr.mxu0 0.0
    %v694 = vand.u32 %v73, 4294901760
    %695 = vmatpush1.msra.mxu0 %v694
    %696 = vmatprep.subr.mxu0 0.0
    %v697 = vand.u32 %v74, 4294901760
    %698 = vmatpush1.msra.mxu0 %v697
    %699 = vmatprep.subr.mxu0 0.0
    %v700 = vand.u32 %v75, 4294901760
    %701 = vmatpush1.msra.mxu0 %v700
    %702 = vmatprep.subr.mxu0 0.0
    %v703 = vand.u32 %v76, 4294901760
    %704 = vmatpush1.msra.mxu0 %v703
    %705 = vmatprep.subr.mxu0 0.0
    %v706 = vand.u32 %v77, 4294901760
    %707 = vmatpush1.msra.mxu0 %v706
    %708 = vmatprep.subr.mxu0 0.0
    %v709 = vand.u32 %v78, 4294901760
    %710 = vmatpush1.msra.mxu0 %v709
    %711 = vmatprep.subr.mxu0 0.0
    %v712 = vand.u32 %v79, 4294901760
    %713 = vmatpush1.msra.mxu0 %v712
    %714 = vmatprep.subr.mxu0 0.0
    %v715 = vand.u32 %v80, 4294901760
    %716 = vmatpush1.msra.mxu0 %v715
    %717 = vmatprep.subr.mxu0 0.0
    %v718 = vand.u32 %v81, 4294901760
    %719 = vmatpush1.msra.mxu0 %v718
    %720 = vmatprep.subr.mxu0 0.0
    %v721 = vand.u32 %v82, 4294901760
    %722 = vmatpush1.msra.mxu0 %v721
    %723 = vmatprep.subr.mxu0 0.0
    %v724 = vand.u32 %v83, 4294901760
    %725 = vmatpush1.msra.mxu0 %v724
    %726 = vmatprep.subr.mxu0 0.0
    %v727 = vand.u32 %v84, 4294901760
    %728 = vmatpush1.msra.mxu0 %v727
    %729 = vmatprep.subr.mxu0 0.0
    %v730 = vand.u32 %v85, 4294901760
    %731 = vmatpush1.msra.mxu0 %v730
    %732 = vmatprep.subr.mxu0 0.0
    %733 = vmatpush1.msra.mxu0 0.0
    %734 = vmatprep.subr.mxu0 0.0
    %735 = vmatpush1.msra.mxu0 0.0
    %736 = vmatprep.subr.mxu0 0.0
    %737 = vmatpush1.msra.mxu0 0.0
    %738 = vmatprep.subr.mxu0 0.0
    %739 = vmatpush1.msra.mxu0 0.0
    %740 = vmatprep.subr.mxu0 0.0
    %741 = vmatpush1.msra.mxu0 0.0
    %742 = vmatprep.subr.mxu0 0.0
    %743 = vmatpush1.msra.mxu0 0.0
    %744 = vmatprep.subr.mxu0 0.0
    %745 = vmatpush1.msra.mxu0 0.0
    %746 = vmatprep.subr.mxu0 0.0
    %747 = vmatpush1.msra.mxu0 0.0
    %748 = vmatprep.subr.mxu0 0.0
    %749 = vmatpush1.msra.mxu0 0.0
    %750 = vmatprep.subr.mxu0 0.0
    %751 = vmatpush1.msra.mxu0 0.0
    %752 = vmatprep.subr.mxu0 0.0
    %753 = vmatpush1.msra.mxu0 0.0
    %754 = vmatprep.subr.mxu0 0.0
    %755 = vmatpush1.msra.mxu0 0.0
    %756 = vmatprep.subr.mxu0 0.0
    %757 = vmatpush1.msra.mxu0 0.0
    %758 = vmatprep.subr.mxu0 0.0
    %759 = vmatpush1.msra.mxu0 0.0
    %760 = vmatprep.subr.mxu0 0.0
    %761 = vmatpush1.msra.mxu0 0.0
    %762 = vmatprep.subr.mxu0 0.0
    %763 = vmatpush1.msra.mxu0 0.0
    %764 = vmatprep.mubr.f32.mxu0 0.0
    %v765 = vand.u32 %v68, 4294901760
    %766 = vmatmul.mubr.f32.gmra.mrb[0].mxu0 %v765
    %v767 = vpop.f32.mrb[0].mxu0
    %v768 = vadd.f32 %v675, %v767
    %v769 = vpop.f32.mrb[0].mxu0
    %770 = vmatprep.mubr.f32.mxu0 0.0
    %v771 = vand.u32 %v69, 4294901760
    %772 = vmatmul.mubr.f32.gmra.mrb[0].mxu0 %v771
    %v773 = vpop.f32.mrb[0].mxu0
    %v774 = vadd.f32 %v681, %v773
    %v775 = vpop.f32.mrb[0].mxu0
    %776 = vdwg.mxu0
    %v777 = vmul.f32 %v768, 0.5
    %v778 = vmul.f32 %v774, 0.5
    %v779 = vmul.f32 %v768, 0.70710677
    %v780 = vmul.f32 %v774, 0.70710677
    %v781 = verf.f32.pop %v779
    %v782 = verf.f32.pop %v780
    %v783 = vadd.f32 %v781, 1.0
    %v784 = vadd.f32 %v782, 1.0
    %v785 = vmul.f32 %v777, %v783
    %v786 = vmul.f32 %v778, %v784
    %v787 = vld [vmem:[#allocation2] sm:$0xff]
    %v788 = vld [vmem:[#allocation2 + $0x8] sm:$0xff]
    %v789 = vld [vmem:[#allocation8] sm:$0xff]
    %v790 = vld [vmem:[#allocation8 + $0x8] sm:$0xff]
    %v791 = vld [vmem:[#allocation8 + $0x10] sm:$0xff]
    %v792 = vld [vmem:[#allocation8 + $0x18] sm:$0xff]
    %v793 = vld [vmem:[#allocation8 + $0x20] sm:$0xff]
    %v794 = vld [vmem:[#allocation8 + $0x28] sm:$0xff]
    %v795 = vld [vmem:[#allocation8 + $0x30] sm:$0xff]
    %v796 = vld [vmem:[#allocation8 + $0x38] sm:$0xff]
    %v797 = vld [vmem:[#allocation8 + $0x40] sm:$0xff]
    %v798 = vld [vmem:[#allocation8 + $0x48] sm:$0xff]
    %v799 = vld [vmem:[#allocation8 + $0x50] sm:$0xff]
    %v800 = vld [vmem:[#allocation8 + $0x58] sm:$0xff]
    %v801 = vld [vmem:[#allocation8 + $0x60] sm:$0xff]
    %v802 = vld [vmem:[#allocation8 + $0x68] sm:$0xff]
    %v803 = vld [vmem:[#allocation8 + $0x70] sm:$0xff]
    %v804 = vld [vmem:[#allocation8 + $0x78] sm:$0xff]
    %805 = vmatprep.subr.mxu0 0.0
    %v806 = vand.u32 %v789, 4294901760
    %807 = vmatpush1.msra.mxu0 %v806
    %808 = vmatprep.subr.mxu0 0.0
    %v809 = vand.u32 %v790, 4294901760
    %810 = vmatpush1.msra.mxu0 %v809
    %811 = vmatprep.subr.mxu0 0.0
    %v812 = vand.u32 %v791, 4294901760
    %813 = vmatpush1.msra.mxu0 %v812
    %814 = vmatprep.subr.mxu0 0.0
    %v815 = vand.u32 %v792, 4294901760
    %816 = vmatpush1.msra.mxu0 %v815
    %817 = vmatprep.subr.mxu0 0.0
    %v818 = vand.u32 %v793, 4294901760
    %819 = vmatpush1.msra.mxu0 %v818
    %820 = vmatprep.subr.mxu0 0.0
    %v821 = vand.u32 %v794, 4294901760
    %822 = vmatpush1.msra.mxu0 %v821
    %823 = vmatprep.subr.mxu0 0.0
    %v824 = vand.u32 %v795, 4294901760
    %825 = vmatpush1.msra.mxu0 %v824
    %826 = vmatprep.subr.mxu0 0.0
    %v827 = vand.u32 %v796, 4294901760
    %828 = vmatpush1.msra.mxu0 %v827
    %829 = vmatprep.subr.mxu0 0.0
    %v830 = vand.u32 %v797, 4294901760
    %831 = vmatpush1.msra.mxu0 %v830
    %832 = vmatprep.subr.mxu0 0.0
    %v833 = vand.u32 %v798, 4294901760
    %834 = vmatpush1.msra.mxu0 %v833
    %835 = vmatprep.subr.mxu0 0.0
    %v836 = vand.u32 %v799, 4294901760
    %837 = vmatpush1.msra.mxu0 %v836
    %838 = vmatprep.subr.mxu0 0.0
    %v839 = vand.u32 %v800, 4294901760
    %840 = vmatpush1.msra.mxu0 %v839
    %841 = vmatprep.subr.mxu0 0.0
    %v842 = vand.u32 %v801, 4294901760
    %843 = vmatpush1.msra.mxu0 %v842
    %844 = vmatprep.subr.mxu0 0.0
    %v845 = vand.u32 %v802, 4294901760
    %846 = vmatpush1.msra.mxu0 %v845
    %847 = vmatprep.subr.mxu0 0.0
    %v848 = vand.u32 %v803, 4294901760
    %849 = vmatpush1.msra.mxu0 %v848
    %850 = vmatprep.subr.mxu0 0.0
    %v851 = vand.u32 %v804, 4294901760
    %852 = vmatpush1.msra.mxu0 %v851
    %853 = vmatprep.subr.mxu0 0.0
    %854 = vmatpush1.msra.mxu0 0.0
    %855 = vmatprep.subr.mxu0 0.0
    %856 = vmatpush1.msra.mxu0 0.0
    %857 = vmatprep.subr.mxu0 0.0
    %858 = vmatpush1.msra.mxu0 0.0
    %859 = vmatprep.subr.mxu0 0.0
    %860 = vmatpush1.msra.mxu0 0.0
    %861 = vmatprep.subr.mxu0 0.0
    %862 = vmatpush1.msra.mxu0 0.0
    %863 = vmatprep.subr.mxu0 0.0
    %864 = vmatpush1.msra.mxu0 0.0
    %865 = vmatprep.subr.mxu0 0.0
    %866 = vmatpush1.msra.mxu0 0.0
    %867 = vmatprep.subr.mxu0 0.0
    %868 = vmatpush1.msra.mxu0 0.0
    %869 = vmatprep.subr.mxu0 0.0
    %870 = vmatpush1.msra.mxu0 0.0
    %871 = vmatprep.subr.mxu0 0.0
    %872 = vmatpush1.msra.mxu0 0.0
    %873 = vmatprep.subr.mxu0 0.0
    %874 = vmatpush1.msra.mxu0 0.0
    %875 = vmatprep.subr.mxu0 0.0
    %876 = vmatpush1.msra.mxu0 0.0
    %877 = vmatprep.subr.mxu0 0.0
    %878 = vmatpush1.msra.mxu0 0.0
    %879 = vmatprep.subr.mxu0 0.0
    %880 = vmatpush1.msra.mxu0 0.0
    %881 = vmatprep.subr.mxu0 0.0
    %882 = vmatpush1.msra.mxu0 0.0
    %883 = vmatprep.subr.mxu0 0.0
    %884 = vmatpush1.msra.mxu0 0.0
    %885 = vmatprep.mubr.f32.mxu0 0.0
    %v886 = vand.u32 %v785, 4294901760
    %v887 = vsub.f32 %v785, %v886
    %v888 = vand.u32 %v887, 4294901760
    %v889 = vsub.f32 %v887, %v888
    %v890 = vand.u32 %v889, 4294901760
    %891 = vmatmul.mubr.f32.gmra.mrb[0].mxu0 %v890
    %v892 = vpop.f32.mrb[0].mxu0
    %v893 = vadd.f32 0.0, %v892
    %v894 = vpop.f32.mrb[0].mxu0
    %895 = vmatprep.mubr.f32.mxu0 0.0
    %v896 = vand.u32 %v786, 4294901760
    %v897 = vsub.f32 %v786, %v896
    %v898 = vand.u32 %v897, 4294901760
    %v899 = vsub.f32 %v897, %v898
    %v900 = vand.u32 %v899, 4294901760
    %901 = vmatmul.mubr.f32.gmra.mrb[0].mxu0 %v900
    %v902 = vpop.f32.mrb[0].mxu0
    %v903 = vadd.f32 0.0, %v902
    %v904 = vpop.f32.mrb[0].mxu0
    %905 = vdwg.mxu0
    %906 = vmatprep.subr.mxu0 0.0
    %v907 = vand.u32 %v789, 4294901760
    %v908 = vsub.f32 %v789, %v907
    %v909 = vand.u32 %v908, 4294901760
    %v910 = vsub.f32 %v908, %v909
    %v911 = vand.u32 %v910, 4294901760
    %912 = vmatpush1.msra.mxu0 %v911
    %913 = vmatprep.subr.mxu0 0.0
    %v914 = vand.u32 %v790, 4294901760
    %v915 = vsub.f32 %v790, %v914
    %v916 = vand.u32 %v915, 4294901760
    %v917 = vsub.f32 %v915, %v916
    %v918 = vand.u32 %v917, 4294901760
    %919 = vmatpush1.msra.mxu0 %v918
    %920 = vmatprep.subr.mxu0 0.0
    %v921 = vand.u32 %v791, 4294901760
    %v922 = vsub.f32 %v791, %v921
    %v923 = vand.u32 %v922, 4294901760
    %v924 = vsub.f32 %v922, %v923
    %v925 = vand.u32 %v924, 4294901760
    %926 = vmatpush1.msra.mxu0 %v925
    %927 = vmatprep.subr.mxu0 0.0
    %v928 = vand.u32 %v792, 4294901760
    %v929 = vsub.f32 %v792, %v928
    %v930 = vand.u32 %v929, 4294901760
    %v931 = vsub.f32 %v929, %v930
    %v932 = vand.u32 %v931, 4294901760
    %933 = vmatpush1.msra.mxu0 %v932
    %934 = vmatprep.subr.mxu0 0.0
    %v935 = vand.u32 %v793, 4294901760
    %v936 = vsub.f32 %v793, %v935
    %v937 = vand.u32 %v936, 4294901760
    %v938 = vsub.f32 %v936, %v937
    %v939 = vand.u32 %v938, 4294901760
    %940 = vmatpush1.msra.mxu0 %v939
    %941 = vmatprep.subr.mxu0 0.0
    %v942 = vand.u32 %v794, 4294901760
    %v943 = vsub.f32 %v794, %v942
    %v944 = vand.u32 %v943, 4294901760
    %v945 = vsub.f32 %v943, %v944
    %v946 = vand.u32 %v945, 4294901760
    %947 = vmatpush1.msra.mxu0 %v946
    %948 = vmatprep.subr.mxu0 0.0
    %v949 = vand.u32 %v795, 4294901760
    %v950 = vsub.f32 %v795, %v949
    %v951 = vand.u32 %v950, 4294901760
    %v952 = vsub.f32 %v950, %v951
    %v953 = vand.u32 %v952, 4294901760
    %954 = vmatpush1.msra.mxu0 %v953
    %955 = vmatprep.subr.mxu0 0.0
    %v956 = vand.u32 %v796, 4294901760
    %v957 = vsub.f32 %v796, %v956
    %v958 = vand.u32 %v957, 4294901760
    %v959 = vsub.f32 %v957, %v958
    %v960 = vand.u32 %v959, 4294901760
    %961 = vmatpush1.msra.mxu0 %v960
    %962 = vmatprep.subr.mxu0 0.0
    %v963 = vand.u32 %v797, 4294901760
    %v964 = vsub.f32 %v797, %v963
    %v965 = vand.u32 %v964, 4294901760
    %v966 = vsub.f32 %v964, %v965
    %v967 = vand.u32 %v966, 4294901760
    %968 = vmatpush1.msra.mxu0 %v967
    %969 = vmatprep.subr.mxu0 0.0
    %v970 = vand.u32 %v798, 4294901760
    %v971 = vsub.f32 %v798, %v970
    %v972 = vand.u32 %v971, 4294901760
    %v973 = vsub.f32 %v971, %v972
    %v974 = vand.u32 %v973, 4294901760
    %975 = vmatpush1.msra.mxu0 %v974
    %976 = vmatprep.subr.mxu0 0.0
    %v977 = vand.u32 %v799, 4294901760
    %v978 = vsub.f32 %v799, %v977
    %v979 = vand.u32 %v978, 4294901760
    %v980 = vsub.f32 %v978, %v979
    %v981 = vand.u32 %v980, 4294901760
    %982 = vmatpush1.msra.mxu0 %v981
    %983 = vmatprep.subr.mxu0 0.0
    %v984 = vand.u32 %v800, 4294901760
    %v985 = vsub.f32 %v800, %v984
    %v986 = vand.u32 %v985, 4294901760
    %v987 = vsub.f32 %v985, %v986
    %v988 = vand.u32 %v987, 4294901760
    %989 = vmatpush1.msra.mxu0 %v988
    %990 = vmatprep.subr.mxu0 0.0
    %v991 = vand.u32 %v801, 4294901760
    %v992 = vsub.f32 %v801, %v991
    %v993 = vand.u32 %v992, 4294901760
    %v994 = vsub.f32 %v992, %v993
    %v995 = vand.u32 %v994, 4294901760
    %996 = vmatpush1.msra.mxu0 %v995
    %997 = vmatprep.subr.mxu0 0.0
    %v998 = vand.u32 %v802, 4294901760
    %v999 = vsub.f32 %v802, %v998
    %v1000 = vand.u32 %v999, 4294901760
    %v1001 = vsub.f32 %v999, %v1000
    %v1002 = vand.u32 %v1001, 4294901760
    %1003 = vmatpush1.msra.mxu0 %v1002
    %1004 = vmatprep.subr.mxu0 0.0
    %v1005 = vand.u32 %v803, 4294901760
    %v1006 = vsub.f32 %v803, %v1005
    %v1007 = vand.u32 %v1006, 4294901760
    %v1008 = vsub.f32 %v1006, %v1007
    %v1009 = vand.u32 %v1008, 4294901760
    %1010 = vmatpush1.msra.mxu0 %v1009
    %1011 = vmatprep.subr.mxu0 0.0
    %v1012 = vand.u32 %v804, 4294901760
    %v1013 = vsub.f32 %v804, %v1012
    %v1014 = vand.u32 %v1013, 4294901760
    %v1015 = vsub.f32 %v1013, %v1014
    %v1016 = vand.u32 %v1015, 4294901760
    %1017 = vmatpush1.msra.mxu0 %v1016
    %1018 = vmatprep.subr.mxu0 0.0
    %1019 = vmatpush1.msra.mxu0 0.0
    %1020 = vmatprep.subr.mxu0 0.0
    %1021 = vmatpush1.msra.mxu0 0.0
    %1022 = vmatprep.subr.mxu0 0.0
    %1023 = vmatpush1.msra.mxu0 0.0
    %1024 = vmatprep.subr.mxu0 0.0
    %1025 = vmatpush1.msra.mxu0 0.0
    %1026 = vmatprep.subr.mxu0 0.0
    %1027 = vmatpush1.msra.mxu0 0.0
    %1028 = vmatprep.subr.mxu0 0.0
    %1029 = vmatpush1.msra.mxu0 0.0
    %1030 = vmatprep.subr.mxu0 0.0
    %1031 = vmatpush1.msra.mxu0 0.0
    %1032 = vmatprep.subr.mxu0 0.0
    %1033 = vmatpush1.msra.mxu0 0.0
    %1034 = vmatprep.subr.mxu0 0.0
    %1035 = vmatpush1.msra.mxu0 0.0
    %1036 = vmatprep.subr.mxu0 0.0
    %1037 = vmatpush1.msra.mxu0 0.0
    %1038 = vmatprep.subr.mxu0 0.0
    %1039 = vmatpush1.msra.mxu0 0.0
    %1040 = vmatprep.subr.mxu0 0.0
    %1041 = vmatpush1.msra.mxu0 0.0
    %1042 = vmatprep.subr.mxu0 0.0
    %1043 = vmatpush1.msra.mxu0 0.0
    %1044 = vmatprep.subr.mxu0 0.0
    %1045 = vmatpush1.msra.mxu0 0.0
    %1046 = vmatprep.subr.mxu0 0.0
    %1047 = vmatpush1.msra.mxu0 0.0
    %1048 = vmatprep.subr.mxu0 0.0
    %1049 = vmatpush1.msra.mxu0 0.0
    %1050 = vmatprep.mubr.f32.mxu0 0.0
    %v1051 = vand.u32 %v785, 4294901760
    %1052 = vmatmul.mubr.f32.gmra.mrb[0].mxu0 %v1051
    %v1053 = vpop.f32.mrb[0].mxu0
    %v1054 = vadd.f32 %v893, %v1053
    %v1055 = vpop.f32.mrb[0].mxu0
    %1056 = vmatprep.mubr.f32.mxu0 0.0
    %v1057 = vand.u32 %v786, 4294901760
    %1058 = vmatmul.mubr.f32.gmra.mrb[0].mxu0 %v1057
    %v1059 = vpop.f32.mrb[0].mxu0
    %v1060 = vadd.f32 %v903, %v1059
    %v1061 = vpop.f32.mrb[0].mxu0
    %1062 = vdwg.mxu0
    %1063 = vmatprep.subr.mxu0 0.0
    %v1064 = vand.u32 %v789, 4294901760
    %v1065 = vsub.f32 %v789, %v1064
    %1066 = vmatpush1.msra.mxu0 %v1065
    %1067 = vmatprep.subr.mxu0 0.0
    %v1068 = vand.u32 %v790, 4294901760
    %v1069 = vsub.f32 %v790, %v1068
    %1070 = vmatpush1.msra.mxu0 %v1069
    %1071 = vmatprep.subr.mxu0 0.0
    %v1072 = vand.u32 %v791, 4294901760
    %v1073 = vsub.f32 %v791, %v1072
    %1074 = vmatpush1.msra.mxu0 %v1073
    %1075 = vmatprep.subr.mxu0 0.0
    %v1076 = vand.u32 %v792, 4294901760
    %v1077 = vsub.f32 %v792, %v1076
    %1078 = vmatpush1.msra.mxu0 %v1077
    %1079 = vmatprep.subr.mxu0 0.0
    %v1080 = vand.u32 %v793, 4294901760
    %v1081 = vsub.f32 %v793, %v1080
    %1082 = vmatpush1.msra.mxu0 %v1081
    %1083 = vmatprep.subr.mxu0 0.0
    %v1084 = vand.u32 %v794, 4294901760
    %v1085 = vsub.f32 %v794, %v1084
    %1086 = vmatpush1.msra.mxu0 %v1085
    %1087 = vmatprep.subr.mxu0 0.0
    %v1088 = vand.u32 %v795, 4294901760
    %v1089 = vsub.f32 %v795, %v1088
    %1090 = vmatpush1.msra.mxu0 %v1089
    %1091 = vmatprep.subr.mxu0 0.0
    %v1092 = vand.u32 %v796, 4294901760
    %v1093 = vsub.f32 %v796, %v1092
    %1094 = vmatpush1.msra.mxu0 %v1093
    %1095 = vmatprep.subr.mxu0 0.0
    %v1096 = vand.u32 %v797, 4294901760
    %v1097 = vsub.f32 %v797, %v1096
    %1098 = vmatpush1.msra.mxu0 %v1097
    %1099 = vmatprep.subr.mxu0 0.0
    %v1100 = vand.u32 %v798, 4294901760
    %v1101 = vsub.f32 %v798, %v1100
    %1102 = vmatpush1.msra.mxu0 %v1101
    %1103 = vmatprep.subr.mxu0 0.0
    %v1104 = vand.u32 %v799, 4294901760
    %v1105 = vsub.f32 %v799, %v1104
    %1106 = vmatpush1.msra.mxu0 %v1105
    %1107 = vmatprep.subr.mxu0 0.0
    %v1108 = vand.u32 %v800, 4294901760
    %v1109 = vsub.f32 %v800, %v1108
    %1110 = vmatpush1.msra.mxu0 %v1109
    %1111 = vmatprep.subr.mxu0 0.0
    %v1112 = vand.u32 %v801, 4294901760
    %v1113 = vsub.f32 %v801, %v1112
    %1114 = vmatpush1.msra.mxu0 %v1113
    %1115 = vmatprep.subr.mxu0 0.0
    %v1116 = vand.u32 %v802, 4294901760
    %v1117 = vsub.f32 %v802, %v1116
    %1118 = vmatpush1.msra.mxu0 %v1117
    %1119 = vmatprep.subr.mxu0 0.0
    %v1120 = vand.u32 %v803, 4294901760
    %v1121 = vsub.f32 %v803, %v1120
    %1122 = vmatpush1.msra.mxu0 %v1121
    %1123 = vmatprep.subr.mxu0 0.0
    %v1124 = vand.u32 %v804, 4294901760
    %v1125 = vsub.f32 %v804, %v1124
    %1126 = vmatpush1.msra.mxu0 %v1125
    %1127 = vmatprep.subr.mxu0 0.0
    %1128 = vmatpush1.msra.mxu0 0.0
    %1129 = vmatprep.subr.mxu0 0.0
    %1130 = vmatpush1.msra.mxu0 0.0
    %1131 = vmatprep.subr.mxu0 0.0
    %1132 = vmatpush1.msra.mxu0 0.0
    %1133 = vmatprep.subr.mxu0 0.0
    %1134 = vmatpush1.msra.mxu0 0.0
    %1135 = vmatprep.subr.mxu0 0.0
    %1136 = vmatpush1.msra.mxu0 0.0
    %1137 = vmatprep.subr.mxu0 0.0
    %1138 = vmatpush1.msra.mxu0 0.0
    %1139 = vmatprep.subr.mxu0 0.0
    %1140 = vmatpush1.msra.mxu0 0.0
    %1141 = vmatprep.subr.mxu0 0.0
    %1142 = vmatpush1.msra.mxu0 0.0
    %1143 = vmatprep.subr.mxu0 0.0
    %1144 = vmatpush1.msra.mxu0 0.0
    %1145 = vmatprep.subr.mxu0 0.0
    %1146 = vmatpush1.msra.mxu0 0.0
    %1147 = vmatprep.subr.mxu0 0.0
    %1148 = vmatpush1.msra.mxu0 0.0
    %1149 = vmatprep.subr.mxu0 0.0
    %1150 = vmatpush1.msra.mxu0 0.0
    %1151 = vmatprep.subr.mxu0 0.0
    %1152 = vmatpush1.msra.mxu0 0.0
    %1153 = vmatprep.subr.mxu0 0.0
    %1154 = vmatpush1.msra.mxu0 0.0
    %1155 = vmatprep.subr.mxu0 0.0
    %1156 = vmatpush1.msra.mxu0 0.0
    %1157 = vmatprep.subr.mxu0 0.0
    %1158 = vmatpush1.msra.mxu0 0.0
    %1159 = vmatprep.mubr.f32.mxu0 0.0
    %v1160 = vand.u32 %v785, 4294901760
    %v1161 = vsub.f32 %v785, %v1160
    %1162 = vmatmul.mubr.f32.gmra.mrb[0].mxu0 %v1161
    %v1163 = vpop.f32.mrb[0].mxu0
    %v1164 = vadd.f32 %v1054, %v1163
    %v1165 = vpop.f32.mrb[0].mxu0
    %1166 = vmatprep.mubr.f32.mxu0 0.0
    %v1167 = vand.u32 %v786, 4294901760
    %v1168 = vsub.f32 %v786, %v1167
    %1169 = vmatmul.mubr.f32.gmra.mrb[0].mxu0 %v1168
    %v1170 = vpop.f32.mrb[0].mxu0
    %v1171 = vadd.f32 %v1060, %v1170
    %v1172 = vpop.f32.mrb[0].mxu0
    %1173 = vdwg.mxu0
    %1174 = vmatprep.subr.mxu0 0.0
    %v1175 = vand.u32 %v789, 4294901760
    %1176 = vmatpush1.msra.mxu0 %v1175
    %1177 = vmatprep.subr.mxu0 0.0
    %v1178 = vand.u32 %v790, 4294901760
    %1179 = vmatpush1.msra.mxu0 %v1178
    %1180 = vmatprep.subr.mxu0 0.0
    %v1181 = vand.u32 %v791, 4294901760
    %1182 = vmatpush1.msra.mxu0 %v1181
    %1183 = vmatprep.subr.mxu0 0.0
    %v1184 = vand.u32 %v792, 4294901760
    %1185 = vmatpush1.msra.mxu0 %v1184
    %1186 = vmatprep.subr.mxu0 0.0
    %v1187 = vand.u32 %v793, 4294901760
    %1188 = vmatpush1.msra.mxu0 %v1187
    %1189 = vmatprep.subr.mxu0 0.0
    %v1190 = vand.u32 %v794, 4294901760
    %1191 = vmatpush1.msra.mxu0 %v1190
    %1192 = vmatprep.subr.mxu0 0.0
    %v1193 = vand.u32 %v795, 4294901760
    %1194 = vmatpush1.msra.mxu0 %v1193
    %1195 = vmatprep.subr.mxu0 0.0
    %v1196 = vand.u32 %v796, 4294901760
    %1197 = vmatpush1.msra.mxu0 %v1196
    %1198 = vmatprep.subr.mxu0 0.0
    %v1199 = vand.u32 %v797, 4294901760
    %1200 = vmatpush1.msra.mxu0 %v1199
    %1201 = vmatprep.subr.mxu0 0.0
    %v1202 = vand.u32 %v798, 4294901760
    %1203 = vmatpush1.msra.mxu0 %v1202
    %1204 = vmatprep.subr.mxu0 0.0
    %v1205 = vand.u32 %v799, 4294901760
    %1206 = vmatpush1.msra.mxu0 %v1205
    %1207 = vmatprep.subr.mxu0 0.0
    %v1208 = vand.u32 %v800, 4294901760
    %1209 = vmatpush1.msra.mxu0 %v1208
    %1210 = vmatprep.subr.mxu0 0.0
    %v1211 = vand.u32 %v801, 4294901760
    %1212 = vmatpush1.msra.mxu0 %v1211
    %1213 = vmatprep.subr.mxu0 0.0
    %v1214 = vand.u32 %v802, 4294901760
    %1215 = vmatpush1.msra.mxu0 %v1214
    %1216 = vmatprep.subr.mxu0 0.0
    %v1217 = vand.u32 %v803, 4294901760
    %1218 = vmatpush1.msra.mxu0 %v1217
    %1219 = vmatprep.subr.mxu0 0.0
    %v1220 = vand.u32 %v804, 4294901760
    %1221 = vmatpush1.msra.mxu0 %v1220
    %1222 = vmatprep.subr.mxu0 0.0
    %1223 = vmatpush1.msra.mxu0 0.0
    %1224 = vmatprep.subr.mxu0 0.0
    %1225 = vmatpush1.msra.mxu0 0.0
    %1226 = vmatprep.subr.mxu0 0.0
    %1227 = vmatpush1.msra.mxu0 0.0
    %1228 = vmatprep.subr.mxu0 0.0
    %1229 = vmatpush1.msra.mxu0 0.0
    %1230 = vmatprep.subr.mxu0 0.0
    %1231 = vmatpush1.msra.mxu0 0.0
    %1232 = vmatprep.subr.mxu0 0.0
    %1233 = vmatpush1.msra.mxu0 0.0
    %1234 = vmatprep.subr.mxu0 0.0
    %1235 = vmatpush1.msra.mxu0 0.0
    %1236 = vmatprep.subr.mxu0 0.0
    %1237 = vmatpush1.msra.mxu0 0.0
    %1238 = vmatprep.subr.mxu0 0.0
    %1239 = vmatpush1.msra.mxu0 0.0
    %1240 = vmatprep.subr.mxu0 0.0
    %1241 = vmatpush1.msra.mxu0 0.0
    %1242 = vmatprep.subr.mxu0 0.0
    %1243 = vmatpush1.msra.mxu0 0.0
    %1244 = vmatprep.subr.mxu0 0.0
    %1245 = vmatpush1.msra.mxu0 0.0
    %1246 = vmatprep.subr.mxu0 0.0
    %1247 = vmatpush1.msra.mxu0 0.0
    %1248 = vmatprep.subr.mxu0 0.0
    %1249 = vmatpush1.msra.mxu0 0.0
    %1250 = vmatprep.subr.mxu0 0.0
    %1251 = vmatpush1.msra.mxu0 0.0
    %1252 = vmatprep.subr.mxu0 0.0
    %1253 = vmatpush1.msra.mxu0 0.0
    %1254 = vmatprep.mubr.f32.mxu0 0.0
    %v1255 = vand.u32 %v785, 4294901760
    %v1256 = vsub.f32 %v785, %v1255
    %v1257 = vand.u32 %v1256, 4294901760
    %1258 = vmatmul.mubr.f32.gmra.mrb[0].mxu0 %v1257
    %v1259 = vpop.f32.mrb[0].mxu0
    %v1260 = vadd.f32 %v1164, %v1259
    %v1261 = vpop.f32.mrb[0].mxu0
    %1262 = vmatprep.mubr.f32.mxu0 0.0
    %v1263 = vand.u32 %v786, 4294901760
    %v1264 = vsub.f32 %v786, %v1263
    %v1265 = vand.u32 %v1264, 4294901760
    %1266 = vmatmul.mubr.f32.gmra.mrb[0].mxu0 %v1265
    %v1267 = vpop.f32.mrb[0].mxu0
    %v1268 = vadd.f32 %v1171, %v1267
    %v1269 = vpop.f32.mrb[0].mxu0
    %1270 = vdwg.mxu0
    %1271 = vmatprep.subr.mxu0 0.0
    %v1272 = vand.u32 %v789, 4294901760
    %v1273 = vsub.f32 %v789, %v1272
    %v1274 = vand.u32 %v1273, 4294901760
    %1275 = vmatpush1.msra.mxu0 %v1274
    %1276 = vmatprep.subr.mxu0 0.0
    %v1277 = vand.u32 %v790, 4294901760
    %v1278 = vsub.f32 %v790, %v1277
    %v1279 = vand.u32 %v1278, 4294901760
    %1280 = vmatpush1.msra.mxu0 %v1279
    %1281 = vmatprep.subr.mxu0 0.0
    %v1282 = vand.u32 %v791, 4294901760
    %v1283 = vsub.f32 %v791, %v1282
    %v1284 = vand.u32 %v1283, 4294901760
    %1285 = vmatpush1.msra.mxu0 %v1284
    %1286 = vmatprep.subr.mxu0 0.0
    %v1287 = vand.u32 %v792, 4294901760
    %v1288 = vsub.f32 %v792, %v1287
    %v1289 = vand.u32 %v1288, 4294901760
    %1290 = vmatpush1.msra.mxu0 %v1289
    %1291 = vmatprep.subr.mxu0 0.0
    %v1292 = vand.u32 %v793, 4294901760
    %v1293 = vsub.f32 %v793, %v1292
    %v1294 = vand.u32 %v1293, 4294901760
    %1295 = vmatpush1.msra.mxu0 %v1294
    %1296 = vmatprep.subr.mxu0 0.0
    %v1297 = vand.u32 %v794, 4294901760
    %v1298 = vsub.f32 %v794, %v1297
    %v1299 = vand.u32 %v1298, 4294901760
    %1300 = vmatpush1.msra.mxu0 %v1299
    %1301 = vmatprep.subr.mxu0 0.0
    %v1302 = vand.u32 %v795, 4294901760
    %v1303 = vsub.f32 %v795, %v1302
    %v1304 = vand.u32 %v1303, 4294901760
    %1305 = vmatpush1.msra.mxu0 %v1304
    %1306 = vmatprep.subr.mxu0 0.0
    %v1307 = vand.u32 %v796, 4294901760
    %v1308 = vsub.f32 %v796, %v1307
    %v1309 = vand.u32 %v1308, 4294901760
    %1310 = vmatpush1.msra.mxu0 %v1309
    %1311 = vmatprep.subr.mxu0 0.0
    %v1312 = vand.u32 %v797, 4294901760
    %v1313 = vsub.f32 %v797, %v1312
    %v1314 = vand.u32 %v1313, 4294901760
    %1315 = vmatpush1.msra.mxu0 %v1314
    %1316 = vmatprep.subr.mxu0 0.0
    %v1317 = vand.u32 %v798, 4294901760
    %v1318 = vsub.f32 %v798, %v1317
    %v1319 = vand.u32 %v1318, 4294901760
    %1320 = vmatpush1.msra.mxu0 %v1319
    %1321 = vmatprep.subr.mxu0 0.0
    %v1322 = vand.u32 %v799, 4294901760
    %v1323 = vsub.f32 %v799, %v1322
    %v1324 = vand.u32 %v1323, 4294901760
    %1325 = vmatpush1.msra.mxu0 %v1324
    %1326 = vmatprep.subr.mxu0 0.0
    %v1327 = vand.u32 %v800, 4294901760
    %v1328 = vsub.f32 %v800, %v1327
    %v1329 = vand.u32 %v1328, 4294901760
    %1330 = vmatpush1.msra.mxu0 %v1329
    %1331 = vmatprep.subr.mxu0 0.0
    %v1332 = vand.u32 %v801, 4294901760
    %v1333 = vsub.f32 %v801, %v1332
    %v1334 = vand.u32 %v1333, 4294901760
    %1335 = vmatpush1.msra.mxu0 %v1334
    %1336 = vmatprep.subr.mxu0 0.0
    %v1337 = vand.u32 %v802, 4294901760
    %v1338 = vsub.f32 %v802, %v1337
    %v1339 = vand.u32 %v1338, 4294901760
    %1340 = vmatpush1.msra.mxu0 %v1339
    %1341 = vmatprep.subr.mxu0 0.0
    %v1342 = vand.u32 %v803, 4294901760
    %v1343 = vsub.f32 %v803, %v1342
    %v1344 = vand.u32 %v1343, 4294901760
    %1345 = vmatpush1.msra.mxu0 %v1344
    %1346 = vmatprep.subr.mxu0 0.0
    %v1347 = vand.u32 %v804, 4294901760
    %v1348 = vsub.f32 %v804, %v1347
    %v1349 = vand.u32 %v1348, 4294901760
    %1350 = vmatpush1.msra.mxu0 %v1349
    %1351 = vmatprep.subr.mxu0 0.0
    %1352 = vmatpush1.msra.mxu0 0.0
    %1353 = vmatprep.subr.mxu0 0.0
    %1354 = vmatpush1.msra.mxu0 0.0
    %1355 = vmatprep.subr.mxu0 0.0
    %1356 = vmatpush1.msra.mxu0 0.0
    %1357 = vmatprep.subr.mxu0 0.0
    %1358 = vmatpush1.msra.mxu0 0.0
    %1359 = vmatprep.subr.mxu0 0.0
    %1360 = vmatpush1.msra.mxu0 0.0
    %1361 = vmatprep.subr.mxu0 0.0
    %1362 = vmatpush1.msra.mxu0 0.0
    %1363 = vmatprep.subr.mxu0 0.0
    %1364 = vmatpush1.msra.mxu0 0.0
    %1365 = vmatprep.subr.mxu0 0.0
    %1366 = vmatpush1.msra.mxu0 0.0
    %1367 = vmatprep.subr.mxu0 0.0
    %1368 = vmatpush1.msra.mxu0 0.0
    %1369 = vmatprep.subr.mxu0 0.0
    %1370 = vmatpush1.msra.mxu0 0.0
    %1371 = vmatprep.subr.mxu0 0.0
    %1372 = vmatpush1.msra.mxu0 0.0
    %1373 = vmatprep.subr.mxu0 0.0
    %1374 = vmatpush1.msra.mxu0 0.0
    %1375 = vmatprep.subr.mxu0 0.0
    %1376 = vmatpush1.msra.mxu0 0.0
    %1377 = vmatprep.subr.mxu0 0.0
    %1378 = vmatpush1.msra.mxu0 0.0
    %1379 = vmatprep.subr.mxu0 0.0
    %1380 = vmatpush1.msra.mxu0 0.0
    %1381 = vmatprep.subr.mxu0 0.0
    %1382 = vmatpush1.msra.mxu0 0.0
    %1383 = vmatprep.mubr.f32.mxu0 0.0
    %v1384 = vand.u32 %v785, 4294901760
    %1385 = vmatmul.mubr.f32.gmra.mrb[0].mxu0 %v1384
    %v1386 = vpop.f32.mrb[0].mxu0
    %v1387 = vadd.f32 %v1260, %v1386
    %v1388 = vpop.f32.mrb[0].mxu0
    %1389 = vmatprep.mubr.f32.mxu0 0.0
    %v1390 = vand.u32 %v786, 4294901760
    %1391 = vmatmul.mubr.f32.gmra.mrb[0].mxu0 %v1390
    %v1392 = vpop.f32.mrb[0].mxu0
    %v1393 = vadd.f32 %v1268, %v1392
    %v1394 = vpop.f32.mrb[0].mxu0
    %1395 = vdwg.mxu0
    %1396 = vmatprep.subr.mxu0 0.0
    %v1397 = vand.u32 %v789, 4294901760
    %1398 = vmatpush1.msra.mxu0 %v1397
    %1399 = vmatprep.subr.mxu0 0.0
    %v1400 = vand.u32 %v790, 4294901760
    %1401 = vmatpush1.msra.mxu0 %v1400
    %1402 = vmatprep.subr.mxu0 0.0
    %v1403 = vand.u32 %v791, 4294901760
    %1404 = vmatpush1.msra.mxu0 %v1403
    %1405 = vmatprep.subr.mxu0 0.0
    %v1406 = vand.u32 %v792, 4294901760
    %1407 = vmatpush1.msra.mxu0 %v1406
    %1408 = vmatprep.subr.mxu0 0.0
    %v1409 = vand.u32 %v793, 4294901760
    %1410 = vmatpush1.msra.mxu0 %v1409
    %1411 = vmatprep.subr.mxu0 0.0
    %v1412 = vand.u32 %v794, 4294901760
    %1413 = vmatpush1.msra.mxu0 %v1412
    %1414 = vmatprep.subr.mxu0 0.0
    %v1415 = vand.u32 %v795, 4294901760
    %1416 = vmatpush1.msra.mxu0 %v1415
    %1417 = vmatprep.subr.mxu0 0.0
    %v1418 = vand.u32 %v796, 4294901760
    %1419 = vmatpush1.msra.mxu0 %v1418
    %1420 = vmatprep.subr.mxu0 0.0
    %v1421 = vand.u32 %v797, 4294901760
    %1422 = vmatpush1.msra.mxu0 %v1421
    %1423 = vmatprep.subr.mxu0 0.0
    %v1424 = vand.u32 %v798, 4294901760
    %1425 = vmatpush1.msra.mxu0 %v1424
    %1426 = vmatprep.subr.mxu0 0.0
    %v1427 = vand.u32 %v799, 4294901760
    %1428 = vmatpush1.msra.mxu0 %v1427
    %1429 = vmatprep.subr.mxu0 0.0
    %v1430 = vand.u32 %v800, 4294901760
    %1431 = vmatpush1.msra.mxu0 %v1430
    %1432 = vmatprep.subr.mxu0 0.0
    %v1433 = vand.u32 %v801, 4294901760
    %1434 = vmatpush1.msra.mxu0 %v1433
    %1435 = vmatprep.subr.mxu0 0.0
    %v1436 = vand.u32 %v802, 4294901760
    %1437 = vmatpush1.msra.mxu0 %v1436
    %1438 = vmatprep.subr.mxu0 0.0
    %v1439 = vand.u32 %v803, 4294901760
    %1440 = vmatpush1.msra.mxu0 %v1439
    %1441 = vmatprep.subr.mxu0 0.0
    %v1442 = vand.u32 %v804, 4294901760
    %1443 = vmatpush1.msra.mxu0 %v1442
    %1444 = vmatprep.subr.mxu0 0.0
    %1445 = vmatpush1.msra.mxu0 0.0
    %1446 = vmatprep.subr.mxu0 0.0
    %1447 = vmatpush1.msra.mxu0 0.0
    %1448 = vmatprep.subr.mxu0 0.0
    %1449 = vmatpush1.msra.mxu0 0.0
    %1450 = vmatprep.subr.mxu0 0.0
    %1451 = vmatpush1.msra.mxu0 0.0
    %1452 = vmatprep.subr.mxu0 0.0
    %1453 = vmatpush1.msra.mxu0 0.0
    %1454 = vmatprep.subr.mxu0 0.0
    %1455 = vmatpush1.msra.mxu0 0.0
    %1456 = vmatprep.subr.mxu0 0.0
    %1457 = vmatpush1.msra.mxu0 0.0
    %1458 = vmatprep.subr.mxu0 0.0
    %1459 = vmatpush1.msra.mxu0 0.0
    %1460 = vmatprep.subr.mxu0 0.0
    %1461 = vmatpush1.msra.mxu0 0.0
    %1462 = vmatprep.subr.mxu0 0.0
    %1463 = vmatpush1.msra.mxu0 0.0
    %1464 = vmatprep.subr.mxu0 0.0
    %1465 = vmatpush1.msra.mxu0 0.0
    %1466 = vmatprep.subr.mxu0 0.0
    %1467 = vmatpush1.msra.mxu0 0.0
    %1468 = vmatprep.subr.mxu0 0.0
    %1469 = vmatpush1.msra.mxu0 0.0
    %1470 = vmatprep.subr.mxu0 0.0
    %1471 = vmatpush1.msra.mxu0 0.0
    %1472 = vmatprep.subr.mxu0 0.0
    %1473 = vmatpush1.msra.mxu0 0.0
    %1474 = vmatprep.subr.mxu0 0.0
    %1475 = vmatpush1.msra.mxu0 0.0
    %1476 = vmatprep.mubr.f32.mxu0 0.0
    %v1477 = vand.u32 %v785, 4294901760
    %1478 = vmatmul.mubr.f32.gmra.mrb[0].mxu0 %v1477
    %v1479 = vpop.f32.mrb[0].mxu0
    %v1480 = vadd.f32 %v1387, %v1479
    %v1481 = vpop.f32.mrb[0].mxu0
    %1482 = vmatprep.mubr.f32.mxu0 0.0
    %v1483 = vand.u32 %v786, 4294901760
    %1484 = vmatmul.mubr.f32.gmra.mrb[0].mxu0 %v1483
    %v1485 = vpop.f32.mrb[0].mxu0
    %v1486 = vadd.f32 %v1393, %v1485
    %v1487 = vpop.f32.mrb[0].mxu0
    %1488 = vdwg.mxu0
    %v1489 = vadd.f32 %v787, %v1480
    %v1490 = vadd.f32 %v788, %v1486
    %1491 = vst [vmem:[#allocation2] sm:$0xff] %v1489
    %1492 = vst [vmem:[#allocation2 + $0x8] sm:$0xff] %v1490
    // Predicated region
    $region38: #{tpu_custom_call.1} parent=1 // pred_check
      %p1493 = pneg %p62
    $region39: #{tpu_custom_call.1} parent=1 // pred_check_branch
      %1495 = sbr.rel (%p1493) target = $region41
    $region40: #{tpu_custom_call.1} parent=1 // pred_region
      %v1496 = vld [vmem:[#allocation2] sm:$0xff]
      %v1497 = vld [vmem:[#allocation2 + $0x8] sm:$0xff]
      %v1498 = vld [vmem:[%s4] sm:$0x1]
      %v1500 = vlaneseq
      %v1501 = vshrl.u32 %v1500, 7
      %v1502 = vsub.s32 0, %v1501
      %v1503 = vrot.slane %v1498, %v1502
      %v1505 = vadd.f32 %v1496, %v1503
      %v1506 = vadd.f32 %v1497, %v1503
      %1507 = vst [vmem:[#allocation9] sm:$0xff] %v1505
      %1508 = vst [vmem:[#allocation9 + $0x8] sm:$0xff] %v1506
    $region41: #{tpu_custom_call.1} parent=1 // pred_fallthru
      _
    // Predicated region
    $region42: #{tpu_custom_call.1} parent=1 // pred_check
      _
    $region43: #{tpu_custom_call.1} parent=1 // pred_check_branch
      %1510 = sbr.rel (0) target = $region45
    $region44: #{tpu_custom_call.1} parent=1 // pred_region
      %s1512 = ssub.s32 256, 256
      %1513 = vsyncadd [#allocation5], %s1512
      %s1514 = sshll.u32 [#allocation9], 4
      %s1515 = int_to_ptr.vmem [resolvable:$true] %s1514
      %1520 = dma.vmem_to_hbm [thread:$0]  %s1515, 256, %s5, [#allocation5], 128, 128, 8
    $region45: #{tpu_custom_call.1} parent=1 // pred_fallthru
      _
    // Predicated region
    $region46: #{tpu_custom_call.1} parent=1 // pred_check
      _
    $region47: #{tpu_custom_call.1} parent=1 // pred_check_branch
      %1522 = sbr.rel (0) target = $region49
    $region48: #{tpu_custom_call.1} parent=1 // pred_region
      %1523 = dma.done [#allocation5], 256
    $region49: #{tpu_custom_call.1} parent=1 // pred_fallthru
      _
    %1524 = vsyncpa [#allocation4], 1
    %1525 = vsyncpa [#allocation7], 1
    %1526 = vsyncpa [#allocation5], 1

</llo_original>
